<compile_context>
chip_gen: v5e
topology: v5e:2x2
jax: 0.10.0
libtpu: 0.0.40
codegen_flags: <defaults>
</compile_context>

<pallas_src>
import math
import functools
import numpy as np

import jax
import jax.numpy as jnp
from jax.experimental import pallas as pl
from jax.experimental.pallas import tpu as pltpu

LANE = 128
SUB = 8
VMEM_LIMIT = 48 * 1024 * 1024     # explicit scoped-VMEM cap (v7x headroom)

# taps for ConvTranspose2d(K=4, stride=2, pad=1), per output parity:
# TAPS[parity] = ((input_offset, kernel_index), (input_offset, kernel_index))
TAPS = (((0, 1), (-1, 3)), ((1, 0), (0, 2)))


def _round_up(x, m):
    return ((x + m - 1) // m) * m


def _row_tile(rows, cap=1024):
    """Largest power-of-two row tile (>=8) dividing `rows`, capped."""
    for t in (1024, 512, 256, 128, 64, 32, 16, 8):
        if t <= cap and rows % t == 0:
            return t
    return rows


# ----------------------------------------------------------------------------
# Pallas kernels
# ----------------------------------------------------------------------------
def _conv_stats_kernel(lhs_ref, rhs_ref, y_ref, ssum_ref, ssq_ref):
    """One (col, parity, row) step of a conv matmul, fused with PER-PARITY
    per-channel sum / sum-of-squares accumulation (BatchNorm batch stats).

    Stats blocks are indexed by (parity, channel-tile) and accumulate only
    across the (innermost, 'arbitrary') row axis, so parity & channel axes can
    both be 'parallel' (megacore on v7x)."""
    r = pl.program_id(2)

    @pl.when(r == 0)
    def _():
        ssum_ref[...] = jnp.zeros_like(ssum_ref)
        ssq_ref[...] = jnp.zeros_like(ssq_ref)

    y = jnp.dot(lhs_ref[0], rhs_ref[0], preferred_element_type=jnp.float32)
    y_ref[...] = y[None].astype(y_ref.dtype)
    ssum_ref[...] += jnp.sum(y, axis=0, keepdims=True)[None]
    ssq_ref[...] += jnp.sum(y * y, axis=0, keepdims=True)[None]


def _conv_tanh_kernel(lhs_ref, rhs_ref, y_ref):
    """Conv matmul tile fused with Tanh (final layer, no BN); emits bf16 so
    the largest layer's HBM write traffic is halved."""
    y = jnp.dot(lhs_ref[...], rhs_ref[...], preferred_element_type=jnp.float32)
    y_ref[...] = jnp.tanh(y).astype(y_ref.dtype)


def _bn_relu_kernel(y_ref, ssum_ref, ssq_ref, g_ref, b_ref, o_ref, *, inv_n, eps):
    """BatchNorm (training-mode batch statistics) + ReLU.

    ssum/ssq arrive as (G, 1, C) per-group partials (G = parities, or the 16
    layer-0 positions); they are reduced in-register here, so no extra XLA
    reduction pass is needed between the two Pallas calls."""
    y = y_ref[...].astype(jnp.float32)                         # (tr, C)
    tot = jnp.sum(ssum_ref[...], axis=0)                       # (1, C)
    tot2 = jnp.sum(ssq_ref[...], axis=0)                       # (1, C)
    mean = tot * inv_n
    var = jnp.maximum(tot2 * inv_n - mean * mean, 0.0)         # biased variance
    scale = g_ref[...] * jax.lax.rsqrt(var + eps)
    shift = b_ref[...] - mean * scale
    o_ref[...] = jnp.maximum(y * scale + shift, 0.0).astype(o_ref.dtype)


# ----------------------------------------------------------------------------
# pallas_call wrappers
# ----------------------------------------------------------------------------
def _pick_col_tile(Np):
    if Np <= 512:
        return Np                          # one column tile: lhs never re-streamed
    return 256 if Np % 256 == 0 else LANE


def _conv_with_stats(lhs, rhs):
    """lhs (P, R, K) bf16, rhs (P, K, N) bf16 ->
       Y (P, Rp, Np) bf16, ssum/ssq (P, 1, Np) fp32 per-parity partials.
    Zero padding of rows / output channels never affects results (zero rows
    and zero weight columns contribute nothing to the matmul or the stats)."""
    P, R, K = lhs.shape
    N = rhs.shape[2]
    Np = _round_up(N, LANE)
    tr = min(512, _round_up(R, SUB))
    Rp = _round_up(R, tr)
    tn = _pick_col_tile(Np)

    lhs_p = jnp.pad(lhs, ((0, 0), (0, Rp - R), (0, 0)))
    rhs_p = jnp.pad(rhs, ((0, 0), (0, 0), (0, Np - N)))

    grid = (Np // tn, P, Rp // tr)          # col, parity, row (row innermost)
    lhs_spec = pl.BlockSpec((1, tr, K), lambda c, p, r: (p, r, 0))
    rhs_spec = pl.BlockSpec((1, K, tn), lambda c, p, r: (p, 0, c))
    y_spec = pl.BlockSpec((1, tr, tn), lambda c, p, r: (p, r, c))
    stat_spec = pl.BlockSpec((1, 1, tn), lambda c, p, r: (p, 0, c))

    return pl.pallas_call(
        _conv_stats_kernel,
        out_shape=(jax.ShapeDtypeStruct((P, Rp, Np), jnp.bfloat16),
                   jax.ShapeDtypeStruct((P, 1, Np), jnp.float32),
                   jax.ShapeDtypeStruct((P, 1, Np), jnp.float32)),
        grid=grid,
        in_specs=[lhs_spec, rhs_spec],
        out_specs=[y_spec, stat_spec, stat_spec],
        compiler_params=pltpu.CompilerParams(
            # stats accumulate only across rows -> row axis "arbitrary";
            # parity & channel tiles are independent -> "parallel" (megacore).
            dimension_semantics=("parallel", "parallel", "arbitrary"),
            vmem_limit_bytes=VMEM_LIMIT),
    )(lhs_p, rhs_p)


def _conv_tanh(lhs, rhs):
    """lhs (R, K) bf16, rhs (K, N) bf16 -> tanh(lhs @ rhs) (Rp, Np) bf16."""
    R, K = lhs.shape
    N = rhs.shape[1]
    Np = _round_up(N, LANE)
    tr = min(512, _round_up(R, SUB))
    Rp = _round_up(R, tr)
    tn = _pick_col_tile(Np)

    lhs_p = jnp.pad(lhs, ((0, Rp - R), (0, 0)))
    rhs_p = jnp.pad(rhs, ((0, 0), (0, Np - N)))

    return pl.pallas_call(
        _conv_tanh_kernel,
        out_shape=jax.ShapeDtypeStruct((Rp, Np), jnp.bfloat16),
        grid=(Np // tn, Rp // tr),
        in_specs=[pl.BlockSpec((tr, K), lambda c, r: (r, 0)),
                  pl.BlockSpec((K, tn), lambda c, r: (0, c))],
        out_specs=pl.BlockSpec((tr, tn), lambda c, r: (r, c)),
        compiler_params=pltpu.CompilerParams(
            dimension_semantics=("parallel", "parallel"),
            vmem_limit_bytes=VMEM_LIMIT),
    )(lhs_p, rhs_p)


def _bn_relu(y2, ssum, ssq, gamma, beta, n_real, eps=1e-5):
    """y2 (rows, C) bf16 pre-BN conv output, ssum/ssq (G, 1, C) fp32 partial
    sums, gamma/beta (1, C) fp32 -> ReLU(BN(y2)) bf16.

    Big tiles: full channel width x up to 1024 rows, 1-D grid; stat / gamma /
    beta blocks have constant index_maps so they stay resident in VMEM."""
    rows, C = y2.shape
    tr = _row_tile(rows)
    kern = functools.partial(_bn_relu_kernel, inv_n=1.0 / float(n_real), eps=eps)
    return pl.pallas_call(
        kern,
        out_shape=jax.ShapeDtypeStruct((rows, C), jnp.bfloat16),
        grid=(rows // tr,),
        in_specs=[pl.BlockSpec((tr, C), lambda r: (r, 0)),
                  pl.BlockSpec(ssum.shape, lambda r: (0, 0, 0)),
                  pl.BlockSpec(ssq.shape, lambda r: (0, 0, 0)),
                  pl.BlockSpec((1, C), lambda r: (0, 0)),
                  pl.BlockSpec((1, C), lambda r: (0, 0))],
        out_specs=pl.BlockSpec((tr, C), lambda r: (r, 0)),
        compiler_params=pltpu.CompilerParams(
            dimension_semantics=("parallel",),
            vmem_limit_bytes=VMEM_LIMIT),
    )(y2, ssum, ssq, gamma, beta)


# ----------------------------------------------------------------------------
# Host-side layout helpers (NHWC, channels-last = lane dimension)
# ----------------------------------------------------------------------------
def build_parity_weights(W):
    """W (Cin, Cout, 4, 4) -> (4, 4*Cin, Cout): per-parity weights, tap-major rows."""
    mats = []
    for ry in (0, 1):
        for rx in (0, 1):
            rows = []
            for (_, ky) in TAPS[ry]:
                for (_, kx) in TAPS[rx]:
                    rows.append(W[:, :, ky, kx])               # (Cin, Cout)
            mats.append(jnp.concatenate(rows, axis=0))          # (4*Cin, Cout)
    return jnp.stack(mats, 0)


def build_parity_patches(x):
    """x NHWC (B, H, W, Cin) -> (4, B*H*W, 4*Cin) per-parity im2col patches
    (tap-major columns; channels stay the fastest / lane axis)."""
    B, H, W, C = x.shape
    xp = jnp.pad(x, ((0, 0), (1, 1), (1, 1), (0, 0)))
    parities = []
    for ry in (0, 1):
        for rx in (0, 1):
            taps = []
            for (oy, _) in TAPS[ry]:
                for (ox, _) in TAPS[rx]:
                    taps.append(xp[:, 1 + oy:1 + oy + H, 1 + ox:1 + ox + W, :])
            t = jnp.stack(taps, axis=3)                          # (B, H, W, 4, C)
            parities.append(t.reshape(B * H * W, 4 * C))
    return jnp.stack(parities, 0)


def assemble_parities_nhwc(y, B, H, W):
    """y (4, B*H*W, C), parity-major -> NHWC (B, 2H, 2W, C)."""
    C = y.shape[-1]
    y = y.reshape(2, 2, B, H, W, C)                 # (ry, rx, b, m, n, c)
    return y.transpose(2, 3, 0, 4, 1, 5).reshape(B, 2 * H, 2 * W, C)


def build_final_weights(W):
    """W (Cin, nc, 4, 4) -> (9*Cin, 4*nc): parities folded into COLUMNS,
    union-of-taps (3x3 neighbourhood) folded into ROWS (zeros for taps a
    parity does not use)."""
    Cin, nc = W.shape[0], W.shape[1]
    Wn = np.asarray(W, np.float32)
    rhs = np.zeros((9 * Cin, 4 * nc), np.float32)
    for ry in (0, 1):
        for rx in (0, 1):
            par = ry * 2 + rx
            for (oy, ky) in TAPS[ry]:
                for (ox, kx) in TAPS[rx]:
                    tap = (oy + 1) * 3 + (ox + 1)
                    rhs[tap * Cin:(tap + 1) * Cin,
                        par * nc:(par + 1) * nc] += Wn[:, :, ky, kx]
    return jnp.asarray(rhs, jnp.bfloat16)


def build_union_patches(x):
    """x NHWC (B, H, W, Cin) -> (B*H*W, 9*Cin) 3x3-neighbourhood patches
    (shared by all 4 output parities of the final layer)."""
    B, H, W, C = x.shape
    xp = jnp.pad(x, ((0, 0), (1, 1), (1, 1), (0, 0)))
    taps = [xp[:, dy:dy + H, dx:dx + W, :] for dy in (0, 1, 2) for dx in (0, 1, 2)]
    return jnp.stack(taps, axis=3).reshape(B * H * W, 9 * C)


# ----------------------------------------------------------------------------
# Reference-only dense scatter matrix (host numpy, tiny test shapes only)
# ----------------------------------------------------------------------------
def convt_dense_matrix(W, Hi, Wi, stride, pad):
    Cin, Cout, K, _ = W.shape
    Ho = (Hi - 1) * stride - 2 * pad + K
    Wo = (Wi - 1) * stride - 2 * pad + K
    M = np.zeros((Cin, Hi, Wi, Cout, Ho, Wo), dtype=np.float32)
    for i in range(Hi):
        for j in range(Wi):
            for ky in range(K):
                for kx in range(K):
                    y = i * stride - pad + ky
                    x = j * stride - pad + kx
                    if 0 <= y < Ho and 0 <= x < Wo:
                        M[:, i, j, :, y, x] += W[:, :, ky, kx]
    return M.reshape(Cin * Hi * Wi, Cout * Ho * Wo), Ho, Wo


def _reference_forward(gen, x):
    """Pure host numpy reference (training-mode BN); test-time self-check only."""
    B = x.shape[0]
    h = np.asarray(x, np.float32).reshape(B, -1)
    Hi = 1
    for layer in gen.layers:
        W = np.asarray(layer["W"], np.float32)
        M, Ho, Wo = convt_dense_matrix(W, Hi, Hi, layer["stride"], layer["pad"])
        cout = layer["cout"]
        y = (h @ M).reshape(B, cout, Ho, Wo)
        if layer["last"]:
            return np.tanh(y)
        mean = y.mean(axis=(0, 2, 3), keepdims=True)
        var = y.var(axis=(0, 2, 3), keepdims=True)                # biased
        g = np.asarray(layer["gamma"])[0, :cout].reshape(1, cout, 1, 1)
        b = np.asarray(layer["beta"])[0, :cout].reshape(1, cout, 1, 1)
        h = np.maximum((y - mean) / np.sqrt(var + 1e-5) * g + b, 0.0).reshape(B, -1)
        Hi = Ho


# ----------------------------------------------------------------------------
# Generator
# ----------------------------------------------------------------------------
class GeneratorPallas:
    """Mirrors the PyTorch DCGAN Generator (bias-free ConvTranspose2d +
    BatchNorm2d with batch statistics + ReLU, final ConvTranspose2d + Tanh)."""

    def __init__(self, size, nz, ngf, nc, key):
        self.size = 2 ** int(math.floor(math.log2(size)))          # newsize
        ngf = 2 ** int(math.floor(math.log2(ngf)))                  # newngf
        self.nz, self.ngf, self.nc = nz, ngf, nc

        mult = self.size // 8
        conv_specs = [(nz, ngf * mult, 1, 0)]                       # 1x1 -> 4x4
        while mult > 1:
            mult //= 2
            conv_specs.append((ngf * 2 * mult, ngf * mult, 2, 1))   # H -> 2H
        conv_specs.append((ngf, nc, 2, 1))                          # final -> Tanh

        self.layers = []
        keys = jax.random.split(key, 3 * len(conv_specs))
        for li, (cin, cout, stride, pad) in enumerate(conv_specs):
            kw, kg, kb = keys[3 * li], keys[3 * li + 1], keys[3 * li + 2]
            # deterministic DCGAN-style synthetic weights (no checkpoint load)
            W = 0.02 * jax.random.normal(kw, (cin, cout, 4, 4), dtype=jnp.float32)
            is_first, is_last = li == 0, li == len(conv_specs) - 1
            layer = dict(W=W, cin=cin, cout=cout, stride=stride, pad=pad,
                         first=is_first, last=is_last)
            if is_first:
                # one wide matmul: columns ordered (position = ky*4+kx, channel);
                # channels padded per position to a multiple of 8 so the full
                # column count (16*cp) is lane-aligned (multiple of 128).
                cp = _round_up(cout, SUB)
                rhs = jnp.zeros((nz, 16, cp), jnp.float32)
                rhs = rhs.at[:, :, :cout].set(
                    jnp.transpose(W, (0, 2, 3, 1)).reshape(nz, 16, cout))
                layer["rhs"] = rhs.reshape(nz, 16 * cp).astype(jnp.bfloat16)
                layer["cpad"] = cp
            elif is_last:
                layer["rhs"] = build_final_weights(W)               # (9*Cin, 4*nc)
            else:
                layer["rhs"] = build_parity_weights(W).astype(jnp.bfloat16)
                layer["cpad"] = _round_up(cout, LANE)
            if not is_last:
                cp = layer["cpad"]
                gamma = 1.0 + 0.02 * jax.random.normal(kg, (1, cout), dtype=jnp.float32)
                beta = 0.02 * jax.random.normal(kb, (1, cout), dtype=jnp.float32)
                layer["gamma"] = jnp.pad(gamma, ((0, 0), (0, cp - cout)),
                                         constant_values=1.0)
                layer["beta"] = jnp.pad(beta, ((0, 0), (0, cp - cout)))
            self.layers.append(layer)

    def __call__(self, x):
        # x: NCHW noise, shape (B, nz, 1, 1)
        B = x.shape[0]
        Bp = _round_up(B, SUB)
        h = jnp.pad(x.reshape(B, -1).astype(jnp.bfloat16), ((0, Bp - B), (0, 0)))

        # ---- layer 0: 1x1 -> 4x4 as ONE wide (B, nz) x (nz, 16*C) matmul ----
        l0 = self.layers[0]
        cout, cp = l0["cout"], l0["cpad"]
        y, ssum, ssq = _conv_with_stats(h[None], l0["rhs"][None])
        y2 = y[0].reshape(Bp * 16, cp)                   # rows = (batch, position)
        ss = ssum.reshape(16, 1, cp)                     # per-position partial stats
        sq = ssq.reshape(16, 1, cp)
        a = _bn_relu(y2, ss, sq, l0["gamma"], l0["beta"], n_real=16 * B)
        h_img = a.reshape(Bp, 4, 4, cp)[:B, :, :, :cout]  # NHWC (B, 4, 4, C)

        # ---- mid stride-2 layers: ConvT (4 parities) + BN + ReLU ------------
        for layer in self.layers[1:-1]:
            Bc, H, W, _ = h_img.shape
            R = Bc * H * W
            lhs = build_parity_patches(h_img)             # (4, R, 4*Cin) bf16
            y, ssum, ssq = _conv_with_stats(lhs, layer["rhs"])
            P, Rp, Np = y.shape
            a = _bn_relu(y.reshape(P * Rp, Np), ssum, ssq,
                         layer["gamma"], layer["beta"], n_real=4 * R)
            a = a.reshape(P, Rp, Np)[:, :R, :layer["cout"]]
            h_img = assemble_parities_nhwc(a, Bc, H, W)   # NHWC (B, 2H, 2W, C)

        # ---- final layer: ConvT + Tanh, parities folded into columns --------
        last = self.layers[-1]
        Bc, H, W, _ = h_img.shape
        R = Bc * H * W
        y = _conv_tanh(build_union_patches(h_img), last["rhs"])    # bf16
        y = y[:R, :4 * self.nc].reshape(Bc, H, W, 2, 2, self.nc)
        out = y.transpose(0, 1, 3, 2, 4, 5).reshape(Bc, 2 * H, 2 * W, self.nc)
        # single NHWC -> NCHW transpose + fp32 cast at the very end
        return out.transpose(0, 3, 1, 2).astype(jnp.float32)


if __name__ == "__main__":
    key = jax.random.PRNGKey(0)
    kparam, kin = jax.random.split(key)

    # small shapes: size=16 -> layers 1x1 -> 4x4 -> 8x8 -> 16x16
    B, size, nz, ngf, nc = 2, 16, 8, 8, 4
    gen = GeneratorPallas(size, nz, ngf, nc, kparam)

    x = jax.random.normal(kin, (B, nz, 1, 1), dtype=jnp.float32)
    fwd = jax.jit(gen.__call__)
    out = jax.block_until_ready(fwd(x))

    assert out.shape == (B, nc, size, size), out.shape
    assert bool(jnp.all(jnp.isfinite(out)))

    # self-check against the (host-only) dense reference of the same module
    ref = _reference_forward(gen, np.asarray(x))
    max_err = float(jnp.max(jnp.abs(out - jnp.asarray(ref))))
    assert max_err < 5e-2, f"max abs diff vs reference: {max_err}"

    print("KERNEL_OK")
</pallas_src>

<mosaic_0001>
module attributes {stable_mosaic.version = 11 : i64} {
  func.func @_conv_stats_kernel(%arg0: i32, %arg1: i32, %arg2: i32, %arg3: memref<1x8x8xbf16, #tpu.memory_space<vmem>>, %arg4: memref<1x8x256xbf16, #tpu.memory_space<vmem>>, %arg5: memref<1x8x256xbf16, #tpu.memory_space<vmem>>, %arg6: memref<1x1x256xf32, #tpu.memory_space<vmem>>, %arg7: memref<1x1x256xf32, #tpu.memory_space<vmem>>) attributes {dimension_semantics = [#tpu.dimension_semantics<parallel>, #tpu.dimension_semantics<parallel>, #tpu.dimension_semantics<arbitrary>], iteration_bounds = array<i64: 1, 1, 1>, scalar_prefetch = 0 : i64, scratch_operands = 0 : i64, tpu.core_type = #tpu.core_type<tc>, window_params = [{transform_indices = @transform_0, window_bounds = array<i64: 1, 8, 8>}, {transform_indices = @transform_1, window_bounds = array<i64: 1, 8, 256>}, {transform_indices = @transform_2, window_bounds = array<i64: 1, 8, 256>}, {transform_indices = @transform_3, window_bounds = array<i64: 1, 1, 256>}, {transform_indices = @transform_4, window_bounds = array<i64: 1, 1, 256>}]} {
    %c0_i32 = arith.constant 0 : i32
    %0 = arith.cmpi eq, %arg2, %c0_i32 : i32
    %1 = arith.extui %0 : i1 to i32
    %c0_i32_0 = arith.constant 0 : i32
    %2 = arith.cmpi ne, %1, %c0_i32_0 : i32
    scf.if %2 {
      %cst_23 = arith.constant 0.000000e+00 : f32
      %24 = vector.broadcast %cst_23 : f32 to vector<1x1x256xf32>
      %c0_24 = arith.constant 0 : index
      %c0_25 = arith.constant 0 : index
      %c0_26 = arith.constant 0 : index
      %25 = vector.load %arg6[%c0_24, %c0_25, %c0_26] : memref<1x1x256xf32, #tpu.memory_space<vmem>>, vector<1x1x256xf32>
      tpu.vector_store %arg6[%c0_24, %c0_25, %c0_26], %24 {strides = array<i32>} : memref<1x1x256xf32, #tpu.memory_space<vmem>>, vector<1x1x256xf32>,
      %cst_27 = arith.constant 0.000000e+00 : f32
      %26 = vector.broadcast %cst_27 : f32 to vector<1x1x256xf32>
      %c0_28 = arith.constant 0 : index
      %c0_29 = arith.constant 0 : index
      %c0_30 = arith.constant 0 : index
      %27 = vector.load %arg7[%c0_28, %c0_29, %c0_30] : memref<1x1x256xf32, #tpu.memory_space<vmem>>, vector<1x1x256xf32>
      tpu.vector_store %arg7[%c0_28, %c0_29, %c0_30], %26 {strides = array<i32>} : memref<1x1x256xf32, #tpu.memory_space<vmem>>, vector<1x1x256xf32>,
    } else {
    }
    %c0 = arith.constant 0 : index
    %c0_1 = arith.constant 0 : index
    %c0_2 = arith.constant 0 : index
    %3 = vector.load %arg3[%c0, %c0_1, %c0_2] : memref<1x8x8xbf16, #tpu.memory_space<vmem>>, vector<1x8x8xbf16>
    %4 = vector.shape_cast %3 : vector<1x8x8xbf16> to vector<8x8xbf16>
    %c0_3 = arith.constant 0 : index
    %c0_4 = arith.constant 0 : index
    %c0_5 = arith.constant 0 : index
    %5 = vector.load %arg4[%c0_3, %c0_4, %c0_5] : memref<1x8x256xbf16, #tpu.memory_space<vmem>>, vector<1x8x256xbf16>
    %6 = vector.shape_cast %5 : vector<1x8x256xbf16> to vector<8x256xbf16>
    %cst = arith.constant dense<0.000000e+00> : vector<8x256xf32>
    %7 = tpu.matmul %4, %6, %cst {dimension_numbers = #tpu.dot_dimension_numbers<[1], [0], [0], [1], [0, 0, 1, 1], [], []>} : vector<8x8xbf16>, vector<8x256xbf16>, vector<8x256xf32> -> vector<8x256xf32>
    %8 = vector.shape_cast %7 : vector<8x256xf32> to vector<1x8x256xf32>
    %9 = arith.truncf %8 : vector<1x8x256xf32> to vector<1x8x256xbf16>
    %c0_6 = arith.constant 0 : index
    %c0_7 = arith.constant 0 : index
    %c0_8 = arith.constant 0 : index
    %10 = vector.load %arg5[%c0_6, %c0_7, %c0_8] : memref<1x8x256xbf16, #tpu.memory_space<vmem>>, vector<1x8x256xbf16>
    tpu.vector_store %arg5[%c0_6, %c0_7, %c0_8], %9 {strides = array<i32>} : memref<1x8x256xbf16, #tpu.memory_space<vmem>>, vector<1x8x256xbf16>,
    %c0_9 = arith.constant 0 : index
    %c0_10 = arith.constant 0 : index
    %c0_11 = arith.constant 0 : index
    %11 = vector.load %arg6[%c0_9, %c0_10, %c0_11] : memref<1x1x256xf32, #tpu.memory_space<vmem>>, vector<1x1x256xf32>
    %cst_12 = arith.constant dense<0.000000e+00> : vector<256xf32>
    %12 = vector.multi_reduction <add>, %7, %cst_12 [0] : vector<8x256xf32> to vector<256xf32>
    %13 = vector.shape_cast %12 : vector<256xf32> to vector<1x256xf32>
    %14 = vector.shape_cast %13 : vector<1x256xf32> to vector<1x1x256xf32>
    %15 = arith.addf %11, %14 : vector<1x1x256xf32>
    %c0_13 = arith.constant 0 : index
    %c0_14 = arith.constant 0 : index
    %c0_15 = arith.constant 0 : index
    %16 = vector.load %arg6[%c0_13, %c0_14, %c0_15] : memref<1x1x256xf32, #tpu.memory_space<vmem>>, vector<1x1x256xf32>
    tpu.vector_store %arg6[%c0_13, %c0_14, %c0_15], %15 {strides = array<i32>} : memref<1x1x256xf32, #tpu.memory_space<vmem>>, vector<1x1x256xf32>,
    %c0_16 = arith.constant 0 : index
    %c0_17 = arith.constant 0 : index
    %c0_18 = arith.constant 0 : index
    %17 = vector.load %arg7[%c0_16, %c0_17, %c0_18] : memref<1x1x256xf32, #tpu.memory_space<vmem>>, vector<1x1x256xf32>
    %18 = arith.mulf %7, %7 : vector<8x256xf32>
    %cst_19 = arith.constant dense<0.000000e+00> : vector<256xf32>
    %19 = vector.multi_reduction <add>, %18, %cst_19 [0] : vector<8x256xf32> to vector<256xf32>
    %20 = vector.shape_cast %19 : vector<256xf32> to vector<1x256xf32>
    %21 = vector.shape_cast %20 : vector<1x256xf32> to vector<1x1x256xf32>
    %22 = arith.addf %17, %21 : vector<1x1x256xf32>
    %c0_20 = arith.constant 0 : index
    %c0_21 = arith.constant 0 : index
    %c0_22 = arith.constant 0 : index
    %23 = vector.load %arg7[%c0_20, %c0_21, %c0_22] : memref<1x1x256xf32, #tpu.memory_space<vmem>>, vector<1x1x256xf32>
    tpu.vector_store %arg7[%c0_20, %c0_21, %c0_22], %22 {strides = array<i32>} : memref<1x1x256xf32, #tpu.memory_space<vmem>>, vector<1x1x256xf32>,
    return
  }
  func.func @transform_0(%arg0: i32, %arg1: i32, %arg2: i32) -> (i32, i32, i32) {
    %c0_i32 = arith.constant 0 : i32
    %c0_i32_0 = arith.constant 0 : i32
    return %arg1, %arg2, %c0_i32 : i32, i32, i32
  }
  func.func @transform_1(%arg0: i32, %arg1: i32, %arg2: i32) -> (i32, i32, i32) {
    %c0_i32 = arith.constant 0 : i32
    %c0_i32_0 = arith.constant 0 : i32
    return %arg1, %c0_i32, %arg0 : i32, i32, i32
  }
  func.func @transform_2(%arg0: i32, %arg1: i32, %arg2: i32) -> (i32, i32, i32) {
    %c0_i32 = arith.constant 0 : i32
    return %arg1, %arg2, %arg0 : i32, i32, i32
  }
  func.func @transform_3(%arg0: i32, %arg1: i32, %arg2: i32) -> (i32, i32, i32) {
    %c0_i32 = arith.constant 0 : i32
    %c0_i32_0 = arith.constant 0 : i32
    return %arg1, %c0_i32, %arg0 : i32, i32, i32
  }
  func.func @transform_4(%arg0: i32, %arg1: i32, %arg2: i32) -> (i32, i32, i32) {
    %c0_i32 = arith.constant 0 : i32
    %c0_i32_0 = arith.constant 0 : i32
    return %arg1, %c0_i32, %arg0 : i32, i32, i32
  }
}

module attributes {stable_mosaic.version = 11 : i64} {
  func.func @_bn_relu_kernel(%arg0: i32, %arg1: memref<128x16xbf16, #tpu.memory_space<vmem>>, %arg2: memref<16x1x16xf32, #tpu.memory_space<vmem>>, %arg3: memref<16x1x16xf32, #tpu.memory_space<vmem>>, %arg4: memref<1x16xf32, #tpu.memory_space<vmem>>, %arg5: memref<1x16xf32, #tpu.memory_space<vmem>>, %arg6: memref<128x16xbf16, #tpu.memory_space<vmem>>) attributes {dimension_semantics = [#tpu.dimension_semantics<parallel>], iteration_bounds = array<i64: 1>, scalar_prefetch = 0 : i64, scratch_operands = 0 : i64, tpu.core_type = #tpu.core_type<tc>, window_params = [{transform_indices = @transform_0, window_bounds = array<i64: 128, 16>}, {pipeline_mode = #tpu.pipeline_mode<synchronous>, transform_indices = @transform_1, window_bounds = array<i64: 16, 1, 16>}, {pipeline_mode = #tpu.pipeline_mode<synchronous>, transform_indices = @transform_2, window_bounds = array<i64: 16, 1, 16>}, {pipeline_mode = #tpu.pipeline_mode<synchronous>, transform_indices = @transform_3, window_bounds = array<i64: 1, 16>}, {pipeline_mode = #tpu.pipeline_mode<synchronous>, transform_indices = @transform_4, window_bounds = array<i64: 1, 16>}, {transform_indices = @transform_5, window_bounds = array<i64: 128, 16>}]} {
    %c0 = arith.constant 0 : index
    %c0_0 = arith.constant 0 : index
    %0 = vector.load %arg1[%c0, %c0_0] : memref<128x16xbf16, #tpu.memory_space<vmem>>, vector<128x16xbf16>
    %1 = arith.extf %0 : vector<128x16xbf16> to vector<128x16xf32>
    %c0_1 = arith.constant 0 : index
    %c0_2 = arith.constant 0 : index
    %c0_3 = arith.constant 0 : index
    %2 = vector.load %arg2[%c0_1, %c0_2, %c0_3] : memref<16x1x16xf32, #tpu.memory_space<vmem>>, vector<16x1x16xf32>
    %cst = arith.constant dense<0.000000e+00> : vector<1x16xf32>
    %3 = vector.multi_reduction <add>, %2, %cst [0] : vector<16x1x16xf32> to vector<1x16xf32>
    %c0_4 = arith.constant 0 : index
    %c0_5 = arith.constant 0 : index
    %c0_6 = arith.constant 0 : index
    %4 = vector.load %arg3[%c0_4, %c0_5, %c0_6] : memref<16x1x16xf32, #tpu.memory_space<vmem>>, vector<16x1x16xf32>
    %cst_7 = arith.constant dense<0.000000e+00> : vector<1x16xf32>
    %5 = vector.multi_reduction <add>, %4, %cst_7 [0] : vector<16x1x16xf32> to vector<1x16xf32>
    %cst_8 = arith.constant 3.125000e-02 : f32
    %6 = vector.broadcast %cst_8 : f32 to vector<1x16xf32>
    %7 = arith.mulf %3, %6 : vector<1x16xf32>
    %cst_9 = arith.constant 3.125000e-02 : f32
    %8 = vector.broadcast %cst_9 : f32 to vector<1x16xf32>
    %9 = arith.mulf %5, %8 : vector<1x16xf32>
    %10 = arith.mulf %7, %7 : vector<1x16xf32>
    %11 = arith.subf %9, %10 : vector<1x16xf32>
    %cst_10 = arith.constant 0.000000e+00 : f32
    %12 = vector.broadcast %cst_10 : f32 to vector<1x16xf32>
    %13 = arith.maximumf %11, %12 : vector<1x16xf32>
    %c0_11 = arith.constant 0 : index
    %c0_12 = arith.constant 0 : index
    %14 = vector.load %arg4[%c0_11, %c0_12] : memref<1x16xf32, #tpu.memory_space<vmem>>, vector<1x16xf32>
    %cst_13 = arith.constant 9.99999974E-6 : f32
    %15 = vector.broadcast %cst_13 : f32 to vector<1x16xf32>
    %16 = arith.addf %13, %15 : vector<1x16xf32>
    %17 = math.rsqrt %16 : vector<1x16xf32>
    %18 = arith.mulf %14, %17 : vector<1x16xf32>
    %c0_14 = arith.constant 0 : index
    %c0_15 = arith.constant 0 : index
    %19 = vector.load %arg5[%c0_14, %c0_15] : memref<1x16xf32, #tpu.memory_space<vmem>>, vector<1x16xf32>
    %20 = arith.mulf %7, %18 : vector<1x16xf32>
    %21 = arith.subf %19, %20 : vector<1x16xf32>
    %22 = vector.broadcast %18 : vector<1x16xf32> to vector<128x16xf32>
    %23 = arith.mulf %1, %22 : vector<128x16xf32>
    %24 = vector.broadcast %21 : vector<1x16xf32> to vector<128x16xf32>
    %25 = arith.addf %23, %24 : vector<128x16xf32>
    %cst_16 = arith.constant 0.000000e+00 : f32
    %26 = vector.broadcast %cst_16 : f32 to vector<128x16xf32>
    %27 = arith.maximumf %25, %26 : vector<128x16xf32>
    %28 = arith.truncf %27 : vector<128x16xf32> to vector<128x16xbf16>
    %c0_17 = arith.constant 0 : index
    %c0_18 = arith.constant 0 : index
    %29 = vector.load %arg6[%c0_17, %c0_18] : memref<128x16xbf16, #tpu.memory_space<vmem>>, vector<128x16xbf16>
    tpu.vector_store %arg6[%c0_17, %c0_18], %28 {strides = array<i32>} : memref<128x16xbf16, #tpu.memory_space<vmem>>, vector<128x16xbf16>,
    return
  }
  func.func @transform_0(%arg0: i32) -> (i32, i32) {
    %c0_i32 = arith.constant 0 : i32
    %c0_i32_0 = arith.constant 0 : i32
    return %arg0, %c0_i32 : i32, i32
  }
  func.func @transform_1(%arg0: i32) -> (i32, i32, i32) {
    %c0_i32 = arith.constant 0 : i32
    %c0_i32_0 = arith.constant 0 : i32
    %c0_i32_1 = arith.constant 0 : i32
    %c0_i32_2 = arith.constant 0 : i32
    return %c0_i32, %c0_i32_0, %c0_i32_1 : i32, i32, i32
  }
  func.func @transform_2(%arg0: i32) -> (i32, i32, i32) {
    %c0_i32 = arith.constant 0 : i32
    %c0_i32_0 = arith.constant 0 : i32
    %c0_i32_1 = arith.constant 0 : i32
    %c0_i32_2 = arith.constant 0 : i32
    return %c0_i32, %c0_i32_0, %c0_i32_1 : i32, i32, i32
  }
  func.func @transform_3(%arg0: i32) -> (i32, i32) {
    %c0_i32 = arith.constant 0 : i32
    %c0_i32_0 = arith.constant 0 : i32
    %c0_i32_1 = arith.constant 0 : i32
    return %c0_i32, %c0_i32_0 : i32, i32
  }
  func.func @transform_4(%arg0: i32) -> (i32, i32) {
    %c0_i32 = arith.constant 0 : i32
    %c0_i32_0 = arith.constant 0 : i32
    %c0_i32_1 = arith.constant 0 : i32
    return %c0_i32, %c0_i32_0 : i32, i32
  }
  func.func @transform_5(%arg0: i32) -> (i32, i32) {
    %c0_i32 = arith.constant 0 : i32
    %c0_i32_0 = arith.constant 0 : i32
    return %arg0, %c0_i32 : i32, i32
  }
}

module attributes {stable_mosaic.version = 11 : i64} {
  func.func @_bn_relu_kernel(%arg0: i32, %arg1: memref<128x128xbf16, #tpu.memory_space<vmem>>, %arg2: memref<4x1x128xf32, #tpu.memory_space<vmem>>, %arg3: memref<4x1x128xf32, #tpu.memory_space<vmem>>, %arg4: memref<1x128xf32, #tpu.memory_space<vmem>>, %arg5: memref<1x128xf32, #tpu.memory_space<vmem>>, %arg6: memref<128x128xbf16, #tpu.memory_space<vmem>>) attributes {dimension_semantics = [#tpu.dimension_semantics<parallel>], iteration_bounds = array<i64: 1>, scalar_prefetch = 0 : i64, scratch_operands = 0 : i64, tpu.core_type = #tpu.core_type<tc>, window_params = [{transform_indices = @transform_0, window_bounds = array<i64: 128, 128>}, {pipeline_mode = #tpu.pipeline_mode<synchronous>, transform_indices = @transform_1, window_bounds = array<i64: 4, 1, 128>}, {pipeline_mode = #tpu.pipeline_mode<synchronous>, transform_indices = @transform_2, window_bounds = array<i64: 4, 1, 128>}, {pipeline_mode = #tpu.pipeline_mode<synchronous>, transform_indices = @transform_3, window_bounds = array<i64: 1, 128>}, {pipeline_mode = #tpu.pipeline_mode<synchronous>, transform_indices = @transform_4, window_bounds = array<i64: 1, 128>}, {transform_indices = @transform_5, window_bounds = array<i64: 128, 128>}]} {
    %c0 = arith.constant 0 : index
    %c0_0 = arith.constant 0 : index
    %0 = vector.load %arg1[%c0, %c0_0] : memref<128x128xbf16, #tpu.memory_space<vmem>>, vector<128x128xbf16>
    %1 = arith.extf %0 : vector<128x128xbf16> to vector<128x128xf32>
    %c0_1 = arith.constant 0 : index
    %c0_2 = arith.constant 0 : index
    %c0_3 = arith.constant 0 : index
    %2 = vector.load %arg2[%c0_1, %c0_2, %c0_3] : memref<4x1x128xf32, #tpu.memory_space<vmem>>, vector<4x1x128xf32>
    %cst = arith.constant dense<0.000000e+00> : vector<1x128xf32>
    %3 = vector.multi_reduction <add>, %2, %cst [0] : vector<4x1x128xf32> to vector<1x128xf32>
    %c0_4 = arith.constant 0 : index
    %c0_5 = arith.constant 0 : index
    %c0_6 = arith.constant 0 : index
    %4 = vector.load %arg3[%c0_4, %c0_5, %c0_6] : memref<4x1x128xf32, #tpu.memory_space<vmem>>, vector<4x1x128xf32>
    %cst_7 = arith.constant dense<0.000000e+00> : vector<1x128xf32>
    %5 = vector.multi_reduction <add>, %4, %cst_7 [0] : vector<4x1x128xf32> to vector<1x128xf32>
    %cst_8 = arith.constant 7.812500e-03 : f32
    %6 = vector.broadcast %cst_8 : f32 to vector<1x128xf32>
    %7 = arith.mulf %3, %6 : vector<1x128xf32>
    %cst_9 = arith.constant 7.812500e-03 : f32
    %8 = vector.broadcast %cst_9 : f32 to vector<1x128xf32>
    %9 = arith.mulf %5, %8 : vector<1x128xf32>
    %10 = arith.mulf %7, %7 : vector<1x128xf32>
    %11 = arith.subf %9, %10 : vector<1x128xf32>
    %cst_10 = arith.constant 0.000000e+00 : f32
    %12 = vector.broadcast %cst_10 : f32 to vector<1x128xf32>
    %13 = arith.maximumf %11, %12 : vector<1x128xf32>
    %c0_11 = arith.constant 0 : index
    %c0_12 = arith.constant 0 : index
    %14 = vector.load %arg4[%c0_11, %c0_12] : memref<1x128xf32, #tpu.memory_space<vmem>>, vector<1x128xf32>
    %cst_13 = arith.constant 9.99999974E-6 : f32
    %15 = vector.broadcast %cst_13 : f32 to vector<1x128xf32>
    %16 = arith.addf %13, %15 : vector<1x128xf32>
    %17 = math.rsqrt %16 : vector<1x128xf32>
    %18 = arith.mulf %14, %17 : vector<1x128xf32>
    %c0_14 = arith.constant 0 : index
    %c0_15 = arith.constant 0 : index
    %19 = vector.load %arg5[%c0_14, %c0_15] : memref<1x128xf32, #tpu.memory_space<vmem>>, vector<1x128xf32>
    %20 = arith.mulf %7, %18 : vector<1x128xf32>
    %21 = arith.subf %19, %20 : vector<1x128xf32>
    %22 = vector.broadcast %18 : vector<1x128xf32> to vector<128x128xf32>
    %23 = arith.mulf %1, %22 : vector<128x128xf32>
    %24 = vector.broadcast %21 : vector<1x128xf32> to vector<128x128xf32>
    %25 = arith.addf %23, %24 : vector<128x128xf32>
    %cst_16 = arith.constant 0.000000e+00 : f32
    %26 = vector.broadcast %cst_16 : f32 to vector<128x128xf32>
    %27 = arith.maximumf %25, %26 : vector<128x128xf32>
    %28 = arith.truncf %27 : vector<128x128xf32> to vector<128x128xbf16>
    %c0_17 = arith.constant 0 : index
    %c0_18 = arith.constant 0 : index
    %29 = vector.load %arg6[%c0_17, %c0_18] : memref<128x128xbf16, #tpu.memory_space<vmem>>, vector<128x128xbf16>
    tpu.vector_store %arg6[%c0_17, %c0_18], %28 {strides = array<i32>} : memref<128x128xbf16, #tpu.memory_space<vmem>>, vector<128x128xbf16>,
    return
  }
  func.func @transform_0(%arg0: i32) -> (i32, i32) {
    %c0_i32 = arith.constant 0 : i32
    %c0_i32_0 = arith.constant 0 : i32
    return %arg0, %c0_i32 : i32, i32
  }
  func.func @transform_1(%arg0: i32) -> (i32, i32, i32) {
    %c0_i32 = arith.constant 0 : i32
    %c0_i32_0 = arith.constant 0 : i32
    %c0_i32_1 = arith.constant 0 : i32
    %c0_i32_2 = arith.constant 0 : i32
    return %c0_i32, %c0_i32_0, %c0_i32_1 : i32, i32, i32
  }
  func.func @transform_2(%arg0: i32) -> (i32, i32, i32) {
    %c0_i32 = arith.constant 0 : i32
    %c0_i32_0 = arith.constant 0 : i32
    %c0_i32_1 = arith.constant 0 : i32
    %c0_i32_2 = arith.constant 0 : i32
    return %c0_i32, %c0_i32_0, %c0_i32_1 : i32, i32, i32
  }
  func.func @transform_3(%arg0: i32) -> (i32, i32) {
    %c0_i32 = arith.constant 0 : i32
    %c0_i32_0 = arith.constant 0 : i32
    %c0_i32_1 = arith.constant 0 : i32
    return %c0_i32, %c0_i32_0 : i32, i32
  }
  func.func @transform_4(%arg0: i32) -> (i32, i32) {
    %c0_i32 = arith.constant 0 : i32
    %c0_i32_0 = arith.constant 0 : i32
    %c0_i32_1 = arith.constant 0 : i32
    return %c0_i32, %c0_i32_0 : i32, i32
  }
  func.func @transform_5(%arg0: i32) -> (i32, i32) {
    %c0_i32 = arith.constant 0 : i32
    %c0_i32_0 = arith.constant 0 : i32
    return %arg0, %c0_i32 : i32, i32
  }
}

module attributes {stable_mosaic.version = 11 : i64} {
  func.func @_conv_stats_kernel(%arg0: i32, %arg1: i32, %arg2: i32, %arg3: memref<1x32x64xbf16, #tpu.memory_space<vmem>>, %arg4: memref<1x64x128xbf16, #tpu.memory_space<vmem>>, %arg5: memref<1x32x128xbf16, #tpu.memory_space<vmem>>, %arg6: memref<1x1x128xf32, #tpu.memory_space<vmem>>, %arg7: memref<1x1x128xf32, #tpu.memory_space<vmem>>) attributes {dimension_semantics = [#tpu.dimension_semantics<parallel>, #tpu.dimension_semantics<parallel>, #tpu.dimension_semantics<arbitrary>], iteration_bounds = array<i64: 1, 4, 1>, scalar_prefetch = 0 : i64, scratch_operands = 0 : i64, tpu.core_type = #tpu.core_type<tc>, window_params = [{transform_indices = @transform_0, window_bounds = array<i64: 1, 32, 64>}, {transform_indices = @transform_1, window_bounds = array<i64: 1, 64, 128>}, {transform_indices = @transform_2, window_bounds = array<i64: 1, 32, 128>}, {transform_indices = @transform_3, window_bounds = array<i64: 1, 1, 128>}, {transform_indices = @transform_4, window_bounds = array<i64: 1, 1, 128>}]} {
    %c0_i32 = arith.constant 0 : i32
    %0 = arith.cmpi eq, %arg2, %c0_i32 : i32
    %1 = arith.extui %0 : i1 to i32
    %c0_i32_0 = arith.constant 0 : i32
    %2 = arith.cmpi ne, %1, %c0_i32_0 : i32
    scf.if %2 {
      %cst_23 = arith.constant 0.000000e+00 : f32
      %24 = vector.broadcast %cst_23 : f32 to vector<1x1x128xf32>
      %c0_24 = arith.constant 0 : index
      %c0_25 = arith.constant 0 : index
      %c0_26 = arith.constant 0 : index
      %25 = vector.load %arg6[%c0_24, %c0_25, %c0_26] : memref<1x1x128xf32, #tpu.memory_space<vmem>>, vector<1x1x128xf32>
      tpu.vector_store %arg6[%c0_24, %c0_25, %c0_26], %24 {strides = array<i32>} : memref<1x1x128xf32, #tpu.memory_space<vmem>>, vector<1x1x128xf32>,
      %cst_27 = arith.constant 0.000000e+00 : f32
      %26 = vector.broadcast %cst_27 : f32 to vector<1x1x128xf32>
      %c0_28 = arith.constant 0 : index
      %c0_29 = arith.constant 0 : index
      %c0_30 = arith.constant 0 : index
      %27 = vector.load %arg7[%c0_28, %c0_29, %c0_30] : memref<1x1x128xf32, #tpu.memory_space<vmem>>, vector<1x1x128xf32>
      tpu.vector_store %arg7[%c0_28, %c0_29, %c0_30], %26 {strides = array<i32>} : memref<1x1x128xf32, #tpu.memory_space<vmem>>, vector<1x1x128xf32>,
    } else {
    }
    %c0 = arith.constant 0 : index
    %c0_1 = arith.constant 0 : index
    %c0_2 = arith.constant 0 : index
    %3 = vector.load %arg3[%c0, %c0_1, %c0_2] : memref<1x32x64xbf16, #tpu.memory_space<vmem>>, vector<1x32x64xbf16>
    %4 = vector.shape_cast %3 : vector<1x32x64xbf16> to vector<32x64xbf16>
    %c0_3 = arith.constant 0 : index
    %c0_4 = arith.constant 0 : index
    %c0_5 = arith.constant 0 : index
    %5 = vector.load %arg4[%c0_3, %c0_4, %c0_5] : memref<1x64x128xbf16, #tpu.memory_space<vmem>>, vector<1x64x128xbf16>
    %6 = vector.shape_cast %5 : vector<1x64x128xbf16> to vector<64x128xbf16>
    %cst = arith.constant dense<0.000000e+00> : vector<32x128xf32>
    %7 = tpu.matmul %4, %6, %cst {dimension_numbers = #tpu.dot_dimension_numbers<[1], [0], [0], [1], [0, 0, 1, 1], [], []>} : vector<32x64xbf16>, vector<64x128xbf16>, vector<32x128xf32> -> vector<32x128xf32>
    %8 = vector.shape_cast %7 : vector<32x128xf32> to vector<1x32x128xf32>
    %9 = arith.truncf %8 : vector<1x32x128xf32> to vector<1x32x128xbf16>
    %c0_6 = arith.constant 0 : index
    %c0_7 = arith.constant 0 : index
    %c0_8 = arith.constant 0 : index
    %10 = vector.load %arg5[%c0_6, %c0_7, %c0_8] : memref<1x32x128xbf16, #tpu.memory_space<vmem>>, vector<1x32x128xbf16>
    tpu.vector_store %arg5[%c0_6, %c0_7, %c0_8], %9 {strides = array<i32>} : memref<1x32x128xbf16, #tpu.memory_space<vmem>>, vector<1x32x128xbf16>,
    %c0_9 = arith.constant 0 : index
    %c0_10 = arith.constant 0 : index
    %c0_11 = arith.constant 0 : index
    %11 = vector.load %arg6[%c0_9, %c0_10, %c0_11] : memref<1x1x128xf32, #tpu.memory_space<vmem>>, vector<1x1x128xf32>
    %cst_12 = arith.constant dense<0.000000e+00> : vector<128xf32>
    %12 = vector.multi_reduction <add>, %7, %cst_12 [0] : vector<32x128xf32> to vector<128xf32>
    %13 = vector.shape_cast %12 : vector<128xf32> to vector<1x128xf32>
    %14 = vector.shape_cast %13 : vector<1x128xf32> to vector<1x1x128xf32>
    %15 = arith.addf %11, %14 : vector<1x1x128xf32>
    %c0_13 = arith.constant 0 : index
    %c0_14 = arith.constant 0 : index
    %c0_15 = arith.constant 0 : index
    %16 = vector.load %arg6[%c0_13, %c0_14, %c0_15] : memref<1x1x128xf32, #tpu.memory_space<vmem>>, vector<1x1x128xf32>
    tpu.vector_store %arg6[%c0_13, %c0_14, %c0_15], %15 {strides = array<i32>} : memref<1x1x128xf32, #tpu.memory_space<vmem>>, vector<1x1x128xf32>,
    %c0_16 = arith.constant 0 : index
    %c0_17 = arith.constant 0 : index
    %c0_18 = arith.constant 0 : index
    %17 = vector.load %arg7[%c0_16, %c0_17, %c0_18] : memref<1x1x128xf32, #tpu.memory_space<vmem>>, vector<1x1x128xf32>
    %18 = arith.mulf %7, %7 : vector<32x128xf32>
    %cst_19 = arith.constant dense<0.000000e+00> : vector<128xf32>
    %19 = vector.multi_reduction <add>, %18, %cst_19 [0] : vector<32x128xf32> to vector<128xf32>
    %20 = vector.shape_cast %19 : vector<128xf32> to vector<1x128xf32>
    %21 = vector.shape_cast %20 : vector<1x128xf32> to vector<1x1x128xf32>
    %22 = arith.addf %17, %21 : vector<1x1x128xf32>
    %c0_20 = arith.constant 0 : index
    %c0_21 = arith.constant 0 : index
    %c0_22 = arith.constant 0 : index
    %23 = vector.load %arg7[%c0_20, %c0_21, %c0_22] : memref<1x1x128xf32, #tpu.memory_space<vmem>>, vector<1x1x128xf32>
    tpu.vector_store %arg7[%c0_20, %c0_21, %c0_22], %22 {strides = array<i32>} : memref<1x1x128xf32, #tpu.memory_space<vmem>>, vector<1x1x128xf32>,
    return
  }
  func.func @transform_0(%arg0: i32, %arg1: i32, %arg2: i32) -> (i32, i32, i32) {
    %c0_i32 = arith.constant 0 : i32
    %c0_i32_0 = arith.constant 0 : i32
    return %arg1, %arg2, %c0_i32 : i32, i32, i32
  }
  func.func @transform_1(%arg0: i32, %arg1: i32, %arg2: i32) -> (i32, i32, i32) {
    %c0_i32 = arith.constant 0 : i32
    %c0_i32_0 = arith.constant 0 : i32
    return %arg1, %c0_i32, %arg0 : i32, i32, i32
  }
  func.func @transform_2(%arg0: i32, %arg1: i32, %arg2: i32) -> (i32, i32, i32) {
    %c0_i32 = arith.constant 0 : i32
    return %arg1, %arg2, %arg0 : i32, i32, i32
  }
  func.func @transform_3(%arg0: i32, %arg1: i32, %arg2: i32) -> (i32, i32, i32) {
    %c0_i32 = arith.constant 0 : i32
    %c0_i32_0 = arith.constant 0 : i32
    return %arg1, %c0_i32, %arg0 : i32, i32, i32
  }
  func.func @transform_4(%arg0: i32, %arg1: i32, %arg2: i32) -> (i32, i32, i32) {
    %c0_i32 = arith.constant 0 : i32
    %c0_i32_0 = arith.constant 0 : i32
    return %arg1, %c0_i32, %arg0 : i32, i32, i32
  }
}

module attributes {stable_mosaic.version = 11 : i64} {
  func.func @_conv_tanh_kernel(%arg0: i32, %arg1: i32, %arg2: memref<128x72xbf16, #tpu.memory_space<vmem>>, %arg3: memref<72x128xbf16, #tpu.memory_space<vmem>>, %arg4: memref<128x128xbf16, #tpu.memory_space<vmem>>) attributes {dimension_semantics = [#tpu.dimension_semantics<parallel>, #tpu.dimension_semantics<parallel>], iteration_bounds = array<i64: 1, 1>, scalar_prefetch = 0 : i64, scratch_operands = 0 : i64, tpu.core_type = #tpu.core_type<tc>, window_params = [{transform_indices = @transform_0, window_bounds = array<i64: 128, 72>}, {transform_indices = @transform_1, window_bounds = array<i64: 72, 128>}, {transform_indices = @transform_2, window_bounds = array<i64: 128, 128>}]} {
    %c0 = arith.constant 0 : index
    %c0_0 = arith.constant 0 : index
    %0 = vector.load %arg2[%c0, %c0_0] : memref<128x72xbf16, #tpu.memory_space<vmem>>, vector<128x72xbf16>
    %c0_1 = arith.constant 0 : index
    %c0_2 = arith.constant 0 : index
    %1 = vector.load %arg3[%c0_1, %c0_2] : memref<72x128xbf16, #tpu.memory_space<vmem>>, vector<72x128xbf16>
    %cst = arith.constant dense<0.000000e+00> : vector<128x128xf32>
    %2 = tpu.matmul %0, %1, %cst {dimension_numbers = #tpu.dot_dimension_numbers<[1], [0], [0], [1], [0, 0, 1, 1], [], []>} : vector<128x72xbf16>, vector<72x128xbf16>, vector<128x128xf32> -> vector<128x128xf32>
    %3 = math.tanh %2 : vector<128x128xf32>
    %4 = arith.truncf %3 : vector<128x128xf32> to vector<128x128xbf16>
    %c0_3 = arith.constant 0 : index
    %c0_4 = arith.constant 0 : index
    %5 = vector.load %arg4[%c0_3, %c0_4] : memref<128x128xbf16, #tpu.memory_space<vmem>>, vector<128x128xbf16>
    tpu.vector_store %arg4[%c0_3, %c0_4], %4 {strides = array<i32>} : memref<128x128xbf16, #tpu.memory_space<vmem>>, vector<128x128xbf16>,
    return
  }
  func.func @transform_0(%arg0: i32, %arg1: i32) -> (i32, i32) {
    %c0_i32 = arith.constant 0 : i32
    %c0_i32_0 = arith.constant 0 : i32
    return %arg1, %c0_i32 : i32, i32
  }
  func.func @transform_1(%arg0: i32, %arg1: i32) -> (i32, i32) {
    %c0_i32 = arith.constant 0 : i32
    %c0_i32_0 = arith.constant 0 : i32
    return %c0_i32, %arg0 : i32, i32
  }
  func.func @transform_2(%arg0: i32, %arg1: i32) -> (i32, i32) {
    %c0_i32 = arith.constant 0 : i32
    return %arg1, %arg0 : i32, i32
  }
}

</mosaic_0001>

<llo_original>
// kernel: squeeze.1
$region0: #{squeeze.1}
  %s0 = inlined_call_operand.vmem [shape: bf16[1,8,256], index: 0, kind: input, shape index: {}]
  %s1 = inlined_call_operand.vmem [shape: bf16[128,16], index: 1, kind: output, shape index: {}]
  $region1: #{squeeze.1} parent=0
    #allocation0 [shape = 'u8[65536]{0}', space=vmem, size = 0x10000, scoped, tag = 'scoped mem for output reshape']
    #allocation1 [shape = 'u8[8192]{0}', space=vmem, size = 0x2000, scoped, tag = 'scoped mem for input reshape']
    %s3 = ssub.s32 256, 1
    %s4 = scalar_lea.vmem %s0, 4
    %s5 = sshrl.u32 %s3, 1
    %s6 = sor.u32 %s3, %s5
    %s7 = sand.u32 %s6, 85
    %s8 = sshrl.u32 %s7, 1
    %s9 = sor.u32 %s7, %s8
    %s10 = sand.u32 51, %s9
    %s11 = sshrl.u32 %s10, 2
    %s12 = sor.u32 %s10, %s11
    %s13 = sand.u32 15, %s12
    %v14 = vld [vmem:[%s4] sm:%s13]
    %v15 = vunpack.c.l.bf16 %v14
    %v16 = vunpack.c.h.bf16 %v14
    %s17 = scalar_lea.vmem [#allocation1], 8
    %18 = vst [vmem:[%s17] sm:%s3] %v15
    %s19 = sshrl.u32 %s3, 1
    %s20 = sor.u32 %s3, %s19
    %s21 = sand.u32 %s20, 85
    %s22 = sshrl.u32 %s21, 1
    %s23 = sor.u32 %s21, %s22
    %s24 = sand.u32 51, %s23
    %s25 = sshrl.u32 %s24, 2
    %s26 = sor.u32 %s24, %s25
    %s27 = sand.u32 15, %s26
    %v28 = vld [vmem:[%s0] sm:%s27]
    %v29 = vunpack.c.l.bf16 %v28
    %v30 = vunpack.c.h.bf16 %v28
    %31 = vst [vmem:[#allocation1] sm:%s3] %v29
    %v32 = vld [vmem:[#allocation1] sm:$0xff]
    %vm33 = vcmask 130048
    %34 = vst.msk [vmem:[#allocation0] ss:$16 sm:$0x3] %vm33, %v32
    %35 = vst.msk [vmem:[#allocation0] ss:$16 sm:$0xc] %vm33, %v32
    %36 = vst.msk [vmem:[#allocation0] ss:$16 sm:$0x30] %vm33, %v32
    %37 = vst.msk [vmem:[#allocation0] ss:$16 sm:$0xc0] %vm33, %v32
    %s38 = scalar_lea.vmem [#allocation1], 8
    %v39 = vld [vmem:[%s38] sm:$0xff]
    %vm40 = vcmask 130048
    %s41 = scalar_lea.vmem [#allocation0], 8
    %42 = vst.msk [vmem:[%s41] ss:$16 sm:$0x3] %vm40, %v39
    %s43 = scalar_lea.vmem [#allocation0], 8
    %44 = vst.msk [vmem:[%s43] ss:$16 sm:$0xc] %vm40, %v39
    %s45 = scalar_lea.vmem [#allocation0], 8
    %46 = vst.msk [vmem:[%s45] ss:$16 sm:$0x30] %vm40, %v39
    %s47 = scalar_lea.vmem [#allocation0], 8
    %48 = vst.msk [vmem:[%s47] ss:$16 sm:$0xc0] %vm40, %v39
    %v49 = vld.sshfl [vmem:[#allocation1] sm:$0xff pattern:$0xb3a29180]
    %50 = vrot.lane.b32.xlu0 %v49, 112
    %v51 = vpop.permute.xlu0 %50
    %vm52 = vcmask 130048
    %s53 = scalar_lea.vmem [#allocation0], 1
    %54 = vst.msk [vmem:[%s53] ss:$8 sm:$0xf] %vm52, %v51
    %s55 = scalar_lea.vmem [#allocation0], 1
    %56 = vst.msk [vmem:[%s55] ss:$8 sm:$0xf0] %vm52, %v51
    %s57 = scalar_lea.vmem [#allocation1], 4
    %v58 = vld.sshfl [vmem:[%s57] sm:$0xff pattern:$0xb3a29180]
    %59 = vrot.lane.b32.xlu0 %v58, 112
    %v60 = vpop.permute.xlu0 %59
    %vm61 = vcmask 130048
    %s62 = scalar_lea.vmem [#allocation0], 65
    %63 = vst.msk [vmem:[%s62] ss:$8 sm:$0xf] %vm61, %v60
    %s64 = scalar_lea.vmem [#allocation0], 65
    %65 = vst.msk [vmem:[%s64] ss:$8 sm:$0xf0] %vm61, %v60
    %v66 = vld.sshfl [vmem:[#allocation1] sm:$0xff pattern:$0xb3a29180]
    %67 = vrot.lane.b32.xlu0 %v66, 96
    %v68 = vpop.permute.xlu0 %67
    %vm69 = vcmask 130048
    %s70 = scalar_lea.vmem [#allocation0], 2
    %71 = vst.msk [vmem:[%s70] ss:$8 sm:$0xf] %vm69, %v68
    %s72 = scalar_lea.vmem [#allocation0], 2
    %73 = vst.msk [vmem:[%s72] ss:$8 sm:$0xf0] %vm69, %v68
    %s74 = scalar_lea.vmem [#allocation1], 4
    %v75 = vld.sshfl [vmem:[%s74] sm:$0xff pattern:$0xb3a29180]
    %76 = vrot.lane.b32.xlu0 %v75, 96
    %v77 = vpop.permute.xlu0 %76
    %vm78 = vcmask 130048
    %s79 = scalar_lea.vmem [#allocation0], 66
    %80 = vst.msk [vmem:[%s79] ss:$8 sm:$0xf] %vm78, %v77
    %s81 = scalar_lea.vmem [#allocation0], 66
    %82 = vst.msk [vmem:[%s81] ss:$8 sm:$0xf0] %vm78, %v77
    %v83 = vld.sshfl [vmem:[#allocation1] sm:$0xff pattern:$0xb3a29180]
    %84 = vrot.lane.b32.xlu0 %v83, 80
    %v85 = vpop.permute.xlu0 %84
    %vm86 = vcmask 130048
    %s87 = scalar_lea.vmem [#allocation0], 3
    %88 = vst.msk [vmem:[%s87] ss:$8 sm:$0xf] %vm86, %v85
    %s89 = scalar_lea.vmem [#allocation0], 3
    %90 = vst.msk [vmem:[%s89] ss:$8 sm:$0xf0] %vm86, %v85
    %s91 = scalar_lea.vmem [#allocation1], 4
    %v92 = vld.sshfl [vmem:[%s91] sm:$0xff pattern:$0xb3a29180]
    %93 = vrot.lane.b32.xlu0 %v92, 80
    %v94 = vpop.permute.xlu0 %93
    %vm95 = vcmask 130048
    %s96 = scalar_lea.vmem [#allocation0], 67
    %97 = vst.msk [vmem:[%s96] ss:$8 sm:$0xf] %vm95, %v94
    %s98 = scalar_lea.vmem [#allocation0], 67
    %99 = vst.msk [vmem:[%s98] ss:$8 sm:$0xf0] %vm95, %v94
    %v100 = vld.sshfl [vmem:[#allocation1] sm:$0xff pattern:$0xb3a29180]
    %101 = vrot.lane.b32.xlu0 %v100, 64
    %v102 = vpop.permute.xlu0 %101
    %vm103 = vcmask 130048
    %s104 = scalar_lea.vmem [#allocation0], 4
    %105 = vst.msk [vmem:[%s104] ss:$8 sm:$0xf] %vm103, %v102
    %s106 = scalar_lea.vmem [#allocation0], 4
    %107 = vst.msk [vmem:[%s106] ss:$8 sm:$0xf0] %vm103, %v102
    %s108 = scalar_lea.vmem [#allocation1], 4
    %v109 = vld.sshfl [vmem:[%s108] sm:$0xff pattern:$0xb3a29180]
    %110 = vrot.lane.b32.xlu0 %v109, 64
    %v111 = vpop.permute.xlu0 %110
    %vm112 = vcmask 130048
    %s113 = scalar_lea.vmem [#allocation0], 68
    %114 = vst.msk [vmem:[%s113] ss:$8 sm:$0xf] %vm112, %v111
    %s115 = scalar_lea.vmem [#allocation0], 68
    %116 = vst.msk [vmem:[%s115] ss:$8 sm:$0xf0] %vm112, %v111
    %v117 = vld.sshfl [vmem:[#allocation1] sm:$0xff pattern:$0xb3a29180]
    %118 = vrot.lane.b32.xlu0 %v117, 48
    %v119 = vpop.permute.xlu0 %118
    %vm120 = vcmask 130048
    %s121 = scalar_lea.vmem [#allocation0], 5
    %122 = vst.msk [vmem:[%s121] ss:$8 sm:$0xf] %vm120, %v119
    %s123 = scalar_lea.vmem [#allocation0], 5
    %124 = vst.msk [vmem:[%s123] ss:$8 sm:$0xf0] %vm120, %v119
    %s125 = scalar_lea.vmem [#allocation1], 4
    %v126 = vld.sshfl [vmem:[%s125] sm:$0xff pattern:$0xb3a29180]
    %127 = vrot.lane.b32.xlu0 %v126, 48
    %v128 = vpop.permute.xlu0 %127
    %vm129 = vcmask 130048
    %s130 = scalar_lea.vmem [#allocation0], 69
    %131 = vst.msk [vmem:[%s130] ss:$8 sm:$0xf] %vm129, %v128
    %s132 = scalar_lea.vmem [#allocation0], 69
    %133 = vst.msk [vmem:[%s132] ss:$8 sm:$0xf0] %vm129, %v128
    %v134 = vld.sshfl [vmem:[#allocation1] sm:$0xff pattern:$0xb3a29180]
    %135 = vrot.lane.b32.xlu0 %v134, 32
    %v136 = vpop.permute.xlu0 %135
    %vm137 = vcmask 130048
    %s138 = scalar_lea.vmem [#allocation0], 6
    %139 = vst.msk [vmem:[%s138] ss:$8 sm:$0xf] %vm137, %v136
    %s140 = scalar_lea.vmem [#allocation0], 6
    %141 = vst.msk [vmem:[%s140] ss:$8 sm:$0xf0] %vm137, %v136
    %s142 = scalar_lea.vmem [#allocation1], 4
    %v143 = vld.sshfl [vmem:[%s142] sm:$0xff pattern:$0xb3a29180]
    %144 = vrot.lane.b32.xlu0 %v143, 32
    %v145 = vpop.permute.xlu0 %144
    %vm146 = vcmask 130048
    %s147 = scalar_lea.vmem [#allocation0], 70
    %148 = vst.msk [vmem:[%s147] ss:$8 sm:$0xf] %vm146, %v145
    %s149 = scalar_lea.vmem [#allocation0], 70
    %150 = vst.msk [vmem:[%s149] ss:$8 sm:$0xf0] %vm146, %v145
    %v151 = vld.sshfl [vmem:[#allocation1] sm:$0xff pattern:$0xb3a29180]
    %152 = vrot.lane.b32.xlu0 %v151, 16
    %v153 = vpop.permute.xlu0 %152
    %vm154 = vcmask 130048
    %s155 = scalar_lea.vmem [#allocation0], 7
    %156 = vst.msk [vmem:[%s155] ss:$8 sm:$0xf] %vm154, %v153
    %s157 = scalar_lea.vmem [#allocation0], 7
    %158 = vst.msk [vmem:[%s157] ss:$8 sm:$0xf0] %vm154, %v153
    %s159 = scalar_lea.vmem [#allocation1], 4
    %v160 = vld.sshfl [vmem:[%s159] sm:$0xff pattern:$0xb3a29180]
    %161 = vrot.lane.b32.xlu0 %v160, 16
    %v162 = vpop.permute.xlu0 %161
    %vm163 = vcmask 130048
    %s164 = scalar_lea.vmem [#allocation0], 71
    %165 = vst.msk [vmem:[%s164] ss:$8 sm:$0xf] %vm163, %v162
    %s166 = scalar_lea.vmem [#allocation0], 71
    %167 = vst.msk [vmem:[%s166] ss:$8 sm:$0xf0] %vm163, %v162
    %s169 = ssub.s32 256, 1
    %v170 = vld [vmem:[#allocation0] sm:%s169]
    %v171 = vpack.c.bf16 0.0, %v170
    %s173 = ssub.s32 16, 1
    %174 = vst [vmem:[%s1] sm:%s173] %v171
    %s175 = scalar_lea.vmem [#allocation0], 8
    %v176 = vld [vmem:[%s175] sm:%s169]
    %v177 = vpack.c.bf16 0.0, %v176
    %s179 = ssub.s32 16, 1
    %s180 = scalar_lea.vmem %s1, 4
    %181 = vst [vmem:[%s180] sm:%s179] %v177
    %s182 = scalar_lea.vmem [#allocation0], 16
    %v183 = vld [vmem:[%s182] sm:%s169]
    %v184 = vpack.c.bf16 0.0, %v183
    %s186 = ssub.s32 16, 1
    %s187 = scalar_lea.vmem %s1, 8
    %188 = vst [vmem:[%s187] sm:%s186] %v184
    %s189 = scalar_lea.vmem [#allocation0], 24
    %v190 = vld [vmem:[%s189] sm:%s169]
    %v191 = vpack.c.bf16 0.0, %v190
    %s193 = ssub.s32 16, 1
    %s194 = scalar_lea.vmem %s1, 12
    %195 = vst [vmem:[%s194] sm:%s193] %v191
    %s196 = scalar_lea.vmem [#allocation0], 32
    %v197 = vld [vmem:[%s196] sm:%s169]
    %v198 = vpack.c.bf16 0.0, %v197
    %s200 = ssub.s32 16, 1
    %s201 = scalar_lea.vmem %s1, 16
    %202 = vst [vmem:[%s201] sm:%s200] %v198
    %s203 = scalar_lea.vmem [#allocation0], 40
    %v204 = vld [vmem:[%s203] sm:%s169]
    %v205 = vpack.c.bf16 0.0, %v204
    %s207 = ssub.s32 16, 1
    %s208 = scalar_lea.vmem %s1, 20
    %209 = vst [vmem:[%s208] sm:%s207] %v205
    %s210 = scalar_lea.vmem [#allocation0], 48
    %v211 = vld [vmem:[%s210] sm:%s169]
    %v212 = vpack.c.bf16 0.0, %v211
    %s214 = ssub.s32 16, 1
    %s215 = scalar_lea.vmem %s1, 24
    %216 = vst [vmem:[%s215] sm:%s214] %v212
    %s217 = scalar_lea.vmem [#allocation0], 56
    %v218 = vld [vmem:[%s217] sm:%s169]
    %v219 = vpack.c.bf16 0.0, %v218
    %s221 = ssub.s32 16, 1
    %s222 = scalar_lea.vmem %s1, 28
    %223 = vst [vmem:[%s222] sm:%s221] %v219
    %s224 = scalar_lea.vmem [#allocation0], 64
    %v225 = vld [vmem:[%s224] sm:%s169]
    %v226 = vpack.c.bf16 0.0, %v225
    %s228 = ssub.s32 16, 1
    %s229 = scalar_lea.vmem %s1, 32
    %230 = vst [vmem:[%s229] sm:%s228] %v226
    %s231 = scalar_lea.vmem [#allocation0], 72
    %v232 = vld [vmem:[%s231] sm:%s169]
    %v233 = vpack.c.bf16 0.0, %v232
    %s235 = ssub.s32 16, 1
    %s236 = scalar_lea.vmem %s1, 36
    %237 = vst [vmem:[%s236] sm:%s235] %v233
    %s238 = scalar_lea.vmem [#allocation0], 80
    %v239 = vld [vmem:[%s238] sm:%s169]
    %v240 = vpack.c.bf16 0.0, %v239
    %s242 = ssub.s32 16, 1
    %s243 = scalar_lea.vmem %s1, 40
    %244 = vst [vmem:[%s243] sm:%s242] %v240
    %s245 = scalar_lea.vmem [#allocation0], 88
    %v246 = vld [vmem:[%s245] sm:%s169]
    %v247 = vpack.c.bf16 0.0, %v246
    %s249 = ssub.s32 16, 1
    %s250 = scalar_lea.vmem %s1, 44
    %251 = vst [vmem:[%s250] sm:%s249] %v247
    %s252 = scalar_lea.vmem [#allocation0], 96
    %v253 = vld [vmem:[%s252] sm:%s169]
    %v254 = vpack.c.bf16 0.0, %v253
    %s256 = ssub.s32 16, 1
    %s257 = scalar_lea.vmem %s1, 48
    %258 = vst [vmem:[%s257] sm:%s256] %v254
    %s259 = scalar_lea.vmem [#allocation0], 104
    %v260 = vld [vmem:[%s259] sm:%s169]
    %v261 = vpack.c.bf16 0.0, %v260
    %s263 = ssub.s32 16, 1
    %s264 = scalar_lea.vmem %s1, 52
    %265 = vst [vmem:[%s264] sm:%s263] %v261
    %s266 = scalar_lea.vmem [#allocation0], 112
    %v267 = vld [vmem:[%s266] sm:%s169]
    %v268 = vpack.c.bf16 0.0, %v267
    %s270 = ssub.s32 16, 1
    %s271 = scalar_lea.vmem %s1, 56
    %272 = vst [vmem:[%s271] sm:%s270] %v268
    %s273 = scalar_lea.vmem [#allocation0], 120
    %v274 = vld [vmem:[%s273] sm:%s169]
    %v275 = vpack.c.bf16 0.0, %v274
    %s277 = ssub.s32 16, 1
    %s278 = scalar_lea.vmem %s1, 60
    %279 = vst [vmem:[%s278] sm:%s277] %v275

// kernel: a_call__.5
$region0: #{a_call__.5}
  #allocation0 [shape = 'u32[]', space=smem, size = 0x4, offset = 0x4, fixed_abs, tag = 'smem constant byte address 0x4 - core index']
  #allocation1 [shape = 'u32[72,128]{1,0:T(1,128)}', space=vmem, size = 0x9000, scoped, tag = 'internal scratch']
  %s0 = inlined_call_operand.vmem [shape: bf16[1,8,8], index: 0, kind: input, shape index: {}]
  %s1 = inlined_call_operand.vmem [shape: bf16[1,8,256], index: 1, kind: input, shape index: {}]
  %s2 = inlined_call_operand.vmem [shape: bf16[1,8,256], index: 2, kind: output, shape index: {0}]
  %s3 = inlined_call_operand.vmem [shape: f32[1,1,256], index: 3, kind: output, shape index: {1}]
  %s4 = inlined_call_operand.vmem [shape: f32[1,1,256], index: 4, kind: output, shape index: {2}]
  %5 = xla_tuple %s2, %s3, %s4
  %s6 = sld [smem:[#allocation0]]
  $region38: #{a_call__.5} parent=0
    _
  %s8 = ssub.s32 1, %s6
  %s9 = scalar_select 0, %s8, %s6
  // Predicated region
  $region2: #{a_call__.5} parent=0 // pred_check
    _
  $region3: #{a_call__.5} parent=0 // pred_check_branch
    %11 = sbr.rel (0) target = $region5
  $region4: #{a_call__.5} parent=0 // pred_region
    _
  $region5: #{a_call__.5} parent=0 // pred_fallthru
    _
  // Predicated region
  $region6: #{a_call__.5} parent=0 // pred_check
    _
  $region7: #{a_call__.5} parent=0 // pred_check_branch
    %13 = sbr.rel (0) target = $region9
  $region8: #{a_call__.5} parent=0 // pred_region
    _
  $region9: #{a_call__.5} parent=0 // pred_fallthru
    _
  %p15 = scmp.eq.s32.totalorder 0, 0
  // Predicated region
  $region10: #{a_call__.5} parent=0 // pred_check
    %p16 = pneg %p15
  $region11: #{a_call__.5} parent=0 // pred_check_branch
    %18 = sbr.rel (%p16) target = $region13
  $region12: #{a_call__.5} parent=0 // pred_region
    %v19 = vlaneseq
    %vm20 = vcmp.ge.s32.totalorder %v19, 0
    %vm21 = vcmp.lt.s32.totalorder %v19, 256
    %vm22 = vmand %vm20, %vm21
    %23 = vst.msk [vmem:[%s3] sm:$0x3] %vm22, 0.0
    %24 = vst.msk [vmem:[%s4] sm:$0x3] %vm22, 0.0
  $region13: #{a_call__.5} parent=0 // pred_fallthru
    _
  %v25 = vld [vmem:[%s0] sm:$0xf]
  %v26 = vld [vmem:[%s1] sm:$0xff]
  %v28 = vunpack.c.l.b16 %v26
  %v29 = vunpack.c.h.b16 %v26
  %v30 = vpack.c.b16 %v28, %v28
  %v31 = vpack.c.b16 %v29, %v29
  %vm32 = vcmask 64512
  %v34 = vsel %vm32, %v25, 0
  %vm36 = vcmask 1043456
  %v38 = vsel %vm36, %v30, 0
  %v41 = vsel %vm36, %v31, 0
  %43 = vmatpush.bf16.msra.mxu0 0
  %44 = vmatpush.bf16.msra.mxu0 0
  %45 = vmatpush.bf16.msra.mxu0 0
  %46 = vmatpush.bf16.msra.mxu0 0
  %47 = vmatpush.bf16.msra.mxu0 0
  %48 = vmatpush.bf16.msra.mxu0 0
  %49 = vmatpush.bf16.msra.mxu0 0
  %50 = vmatpush.bf16.msra.mxu0 %v38
  %51 = vmatmul.bf16.gmra.mxu0 %v34
  %v52 = vpop.f32.mrf.mxu0
  %v53 = vadd.f32 0.0, %v52
  %v54 = vpop.f32.mrf.mxu0
  %55 = vdwg.mxu0
  %56 = vmatpush.bf16.msra.mxu0 0
  %57 = vmatpush.bf16.msra.mxu0 0
  %58 = vmatpush.bf16.msra.mxu0 0
  %59 = vmatpush.bf16.msra.mxu0 0
  %60 = vmatpush.bf16.msra.mxu0 0
  %61 = vmatpush.bf16.msra.mxu0 0
  %62 = vmatpush.bf16.msra.mxu0 0
  %63 = vmatpush.bf16.msra.mxu0 %v41
  %64 = vmatmul.bf16.gmra.mxu0 %v34
  %v65 = vpop.f32.mrf.mxu0
  %v66 = vadd.f32 0.0, %v65
  %v67 = vpop.f32.mrf.mxu0
  %68 = vdwg.mxu0
  %v69 = vpack.c.bf16 %v66, %v53
  %70 = vst [vmem:[%s2] sm:$0xff] %v69
  %v71 = vld [vmem:[%s3] sm:$0x3]
  %v72 = vrot.slane %v53, 4
  %v73 = vadd.f32 %v53, %v72
  %v74 = vrot.slane %v73, 2
  %v75 = vadd.f32 %v73, %v74
  %v76 = vrot.slane %v75, 1
  %v77 = vadd.f32 %v75, %v76
  %v78 = vrot.slane %v66, 4
  %v79 = vadd.f32 %v66, %v78
  %v80 = vrot.slane %v79, 2
  %v81 = vadd.f32 %v79, %v80
  %v82 = vrot.slane %v81, 1
  %v83 = vadd.f32 %v81, %v82
  %v86 = vrot.slane %v83, 7
  %vm87 = vcmask 1040384
  %v88 = vsel %vm87, %v77, %v86
  %v90 = vadd.f32 %v71, %v88
  %v91 = vlaneseq
  %vm92 = vcmp.ge.s32.totalorder %v91, 0
  %vm93 = vcmp.lt.s32.totalorder %v91, 256
  %vm94 = vmand %vm92, %vm93
  %95 = vst.msk [vmem:[%s3] sm:$0x3] %vm94, %v90
  %v96 = vld [vmem:[%s4] sm:$0x3]
  %v97 = vmul.f32 %v53, %v53
  %v98 = vmul.f32 %v66, %v66
  %v99 = vrot.slane %v97, 4
  %v100 = vadd.f32 %v97, %v99
  %v101 = vrot.slane %v100, 2
  %v102 = vadd.f32 %v100, %v101
  %v103 = vrot.slane %v102, 1
  %v104 = vadd.f32 %v102, %v103
  %v105 = vrot.slane %v98, 4
  %v106 = vadd.f32 %v98, %v105
  %v107 = vrot.slane %v106, 2
  %v108 = vadd.f32 %v106, %v107
  %v109 = vrot.slane %v108, 1
  %v110 = vadd.f32 %v108, %v109
  %v113 = vrot.slane %v110, 7
  %v114 = vsel %vm87, %v104, %v113
  %v116 = vadd.f32 %v96, %v114
  %117 = vst.msk [vmem:[%s4] sm:$0x3] %vm94, %v116
  // Predicated region
  $region14: #{a_call__.5} parent=0 // pred_check
    _
  $region15: #{a_call__.5} parent=0 // pred_check_branch
    %119 = sbr.rel (0) target = $region17
  $region16: #{a_call__.5} parent=0 // pred_region
    _
  $region17: #{a_call__.5} parent=0 // pred_fallthru
    _
  // Predicated region
  $region18: #{a_call__.5} parent=0 // pred_check
    _
  $region19: #{a_call__.5} parent=0 // pred_check_branch
    %121 = sbr.rel (0) target = $region21
  $region20: #{a_call__.5} parent=0 // pred_region
    _
  $region21: #{a_call__.5} parent=0 // pred_fallthru
    _
  // Predicated region
  $region22: #{a_call__.5} parent=0 // pred_check
    _
  $region23: #{a_call__.5} parent=0 // pred_check_branch
    %123 = sbr.rel (0) target = $region25
  $region24: #{a_call__.5} parent=0 // pred_region
    _
  $region25: #{a_call__.5} parent=0 // pred_fallthru
    _
  // Predicated region
  $region26: #{a_call__.5} parent=0 // pred_check
    _
  $region27: #{a_call__.5} parent=0 // pred_check_branch
    %125 = sbr.rel (0) target = $region29
  $region28: #{a_call__.5} parent=0 // pred_region
    _
  $region29: #{a_call__.5} parent=0 // pred_fallthru
    _
  // Predicated region
  $region30: #{a_call__.5} parent=0 // pred_check
    _
  $region31: #{a_call__.5} parent=0 // pred_check_branch
    %127 = sbr.rel (0) target = $region33
  $region32: #{a_call__.5} parent=0 // pred_region
    _
  $region33: #{a_call__.5} parent=0 // pred_fallthru
    _
  // Predicated region
  $region34: #{a_call__.5} parent=0 // pred_check
    _
  $region35: #{a_call__.5} parent=0 // pred_check_branch
    %129 = sbr.rel (0) target = $region37
  $region36: #{a_call__.5} parent=0 // pred_region
    _
  $region37: #{a_call__.5} parent=0 // pred_fallthru
    _

// kernel: a_call__.6
$region0: #{a_call__.6}
  #allocation0 [shape = 'u32[]', space=smem, size = 0x4, offset = 0x4, fixed_abs, tag = 'smem constant byte address 0x4 - core index']
  #allocation1 [shape = 'u32[72,128]{1,0:T(1,128)}', space=vmem, size = 0x9000, scoped, tag = 'internal scratch']
  %s0 = inlined_call_operand.vmem [shape: bf16[128,16], index: 0, kind: input, shape index: {}]
  %s1 = inlined_call_operand.vmem [shape: f32[16,1,16], index: 1, kind: input, shape index: {}]
  %s2 = inlined_call_operand.vmem [shape: f32[16,1,16], index: 2, kind: input, shape index: {}]
  %s3 = inlined_call_operand.vmem [shape: f32[1,16], index: 3, kind: input, shape index: {}]
  %s4 = inlined_call_operand.vmem [shape: f32[1,16], index: 4, kind: input, shape index: {}]
  %s5 = inlined_call_operand.vmem [shape: bf16[128,16], index: 5, kind: output, shape index: {}]
  %s6 = sld [smem:[#allocation0]]
  $region30: #{a_call__.6} parent=0
    _
  %s8 = ssub.s32 1, %s6
  %s9 = scalar_select 0, %s8, %s6
  // Predicated region
  $region2: #{a_call__.6} parent=0 // pred_check
    _
  $region3: #{a_call__.6} parent=0 // pred_check_branch
    %11 = sbr.rel (0) target = $region5
  $region4: #{a_call__.6} parent=0 // pred_region
    _
  $region5: #{a_call__.6} parent=0 // pred_fallthru
    _
  // Predicated region
  $region6: #{a_call__.6} parent=0 // pred_check
    _
  $region7: #{a_call__.6} parent=0 // pred_check_branch
    %13 = sbr.rel (0) target = $region9
  $region8: #{a_call__.6} parent=0 // pred_region
    _
  $region9: #{a_call__.6} parent=0 // pred_fallthru
    _
  // Predicated region
  $region10: #{a_call__.6} parent=0 // pred_check
    _
  $region11: #{a_call__.6} parent=0 // pred_check_branch
    %15 = sbr.rel (0) target = $region13
  $region12: #{a_call__.6} parent=0 // pred_region
    _
  $region13: #{a_call__.6} parent=0 // pred_fallthru
    _
  // Predicated region
  $region14: #{a_call__.6} parent=0 // pred_check
    _
  $region15: #{a_call__.6} parent=0 // pred_check_branch
    %17 = sbr.rel (0) target = $region17
  $region16: #{a_call__.6} parent=0 // pred_region
    _
  $region17: #{a_call__.6} parent=0 // pred_fallthru
    _
  // Predicated region
  $region18: #{a_call__.6} parent=0 // pred_check
    _
  $region19: #{a_call__.6} parent=0 // pred_check_branch
    %19 = sbr.rel (0) target = $region21
  $region20: #{a_call__.6} parent=0 // pred_region
    _
  $region21: #{a_call__.6} parent=0 // pred_fallthru
    _
  %v20 = vld [vmem:[%s0] sm:$0xf]
  %v21 = vld [vmem:[%s0 + $0x4] sm:$0xf]
  %v22 = vld [vmem:[%s0 + $0x8] sm:$0xf]
  %v23 = vld [vmem:[%s0 + $0xc] sm:$0xf]
  %v24 = vld [vmem:[%s0 + $0x10] sm:$0xf]
  %v25 = vld [vmem:[%s0 + $0x14] sm:$0xf]
  %v26 = vld [vmem:[%s0 + $0x18] sm:$0xf]
  %v27 = vld [vmem:[%s0 + $0x1c] sm:$0xf]
  %v28 = vld [vmem:[%s0 + $0x20] sm:$0xf]
  %v29 = vld [vmem:[%s0 + $0x24] sm:$0xf]
  %v30 = vld [vmem:[%s0 + $0x28] sm:$0xf]
  %v31 = vld [vmem:[%s0 + $0x2c] sm:$0xf]
  %v32 = vld [vmem:[%s0 + $0x30] sm:$0xf]
  %v33 = vld [vmem:[%s0 + $0x34] sm:$0xf]
  %v34 = vld [vmem:[%s0 + $0x38] sm:$0xf]
  %v35 = vld [vmem:[%s0 + $0x3c] sm:$0xf]
  %v36 = vunpack.c.l.bf16 %v20
  %v37 = vunpack.c.l.bf16 %v21
  %v38 = vunpack.c.l.bf16 %v22
  %v39 = vunpack.c.l.bf16 %v23
  %v40 = vunpack.c.l.bf16 %v24
  %v41 = vunpack.c.l.bf16 %v25
  %v42 = vunpack.c.l.bf16 %v26
  %v43 = vunpack.c.l.bf16 %v27
  %v44 = vunpack.c.l.bf16 %v28
  %v45 = vunpack.c.l.bf16 %v29
  %v46 = vunpack.c.l.bf16 %v30
  %v47 = vunpack.c.l.bf16 %v31
  %v48 = vunpack.c.l.bf16 %v32
  %v49 = vunpack.c.l.bf16 %v33
  %v50 = vunpack.c.l.bf16 %v34
  %v51 = vunpack.c.l.bf16 %v35
  %v52 = vld [vmem:[%s1] sm:$0x1]
  %v53 = vld [vmem:[%s1 + $0x1] sm:$0x1]
  %v54 = vld [vmem:[%s1 + $0x2] sm:$0x1]
  %v55 = vld [vmem:[%s1 + $0x3] sm:$0x1]
  %v56 = vld [vmem:[%s1 + $0x4] sm:$0x1]
  %v57 = vld [vmem:[%s1 + $0x5] sm:$0x1]
  %v58 = vld [vmem:[%s1 + $0x6] sm:$0x1]
  %v59 = vld [vmem:[%s1 + $0x7] sm:$0x1]
  %v60 = vld [vmem:[%s1 + $0x8] sm:$0x1]
  %v61 = vld [vmem:[%s1 + $0x9] sm:$0x1]
  %v62 = vld [vmem:[%s1 + $0xa] sm:$0x1]
  %v63 = vld [vmem:[%s1 + $0xb] sm:$0x1]
  %v64 = vld [vmem:[%s1 + $0xc] sm:$0x1]
  %v65 = vld [vmem:[%s1 + $0xd] sm:$0x1]
  %v66 = vld [vmem:[%s1 + $0xe] sm:$0x1]
  %v67 = vld [vmem:[%s1 + $0xf] sm:$0x1]
  %vm68 = vcmask 122880
  %v69 = vsel %vm68, %v52, 0.0
  %v70 = vsel %vm68, %v53, 0.0
  %v71 = vadd.f32 %v69, %v70
  %v72 = vsel %vm68, %v54, 0.0
  %v73 = vadd.f32 %v71, %v72
  %v74 = vsel %vm68, %v55, 0.0
  %v75 = vadd.f32 %v73, %v74
  %v76 = vsel %vm68, %v56, 0.0
  %v77 = vadd.f32 %v75, %v76
  %v78 = vsel %vm68, %v57, 0.0
  %v79 = vadd.f32 %v77, %v78
  %v80 = vsel %vm68, %v58, 0.0
  %v81 = vadd.f32 %v79, %v80
  %v82 = vsel %vm68, %v59, 0.0
  %v83 = vadd.f32 %v81, %v82
  %v84 = vsel %vm68, %v60, 0.0
  %v85 = vadd.f32 %v83, %v84
  %v86 = vsel %vm68, %v61, 0.0
  %v87 = vadd.f32 %v85, %v86
  %v88 = vsel %vm68, %v62, 0.0
  %v89 = vadd.f32 %v87, %v88
  %v90 = vsel %vm68, %v63, 0.0
  %v91 = vadd.f32 %v89, %v90
  %v92 = vsel %vm68, %v64, 0.0
  %v93 = vadd.f32 %v91, %v92
  %v94 = vsel %vm68, %v65, 0.0
  %v95 = vadd.f32 %v93, %v94
  %v96 = vsel %vm68, %v66, 0.0
  %v97 = vadd.f32 %v95, %v96
  %v98 = vsel %vm68, %v67, 0.0
  %v99 = vadd.f32 %v97, %v98
  %v100 = vld [vmem:[%s2] sm:$0x1]
  %v101 = vld [vmem:[%s2 + $0x1] sm:$0x1]
  %v102 = vld [vmem:[%s2 + $0x2] sm:$0x1]
  %v103 = vld [vmem:[%s2 + $0x3] sm:$0x1]
  %v104 = vld [vmem:[%s2 + $0x4] sm:$0x1]
  %v105 = vld [vmem:[%s2 + $0x5] sm:$0x1]
  %v106 = vld [vmem:[%s2 + $0x6] sm:$0x1]
  %v107 = vld [vmem:[%s2 + $0x7] sm:$0x1]
  %v108 = vld [vmem:[%s2 + $0x8] sm:$0x1]
  %v109 = vld [vmem:[%s2 + $0x9] sm:$0x1]
  %v110 = vld [vmem:[%s2 + $0xa] sm:$0x1]
  %v111 = vld [vmem:[%s2 + $0xb] sm:$0x1]
  %v112 = vld [vmem:[%s2 + $0xc] sm:$0x1]
  %v113 = vld [vmem:[%s2 + $0xd] sm:$0x1]
  %v114 = vld [vmem:[%s2 + $0xe] sm:$0x1]
  %v115 = vld [vmem:[%s2 + $0xf] sm:$0x1]
  %v116 = vsel %vm68, %v100, 0.0
  %v117 = vsel %vm68, %v101, 0.0
  %v118 = vadd.f32 %v116, %v117
  %v119 = vsel %vm68, %v102, 0.0
  %v120 = vadd.f32 %v118, %v119
  %v121 = vsel %vm68, %v103, 0.0
  %v122 = vadd.f32 %v120, %v121
  %v123 = vsel %vm68, %v104, 0.0
  %v124 = vadd.f32 %v122, %v123
  %v125 = vsel %vm68, %v105, 0.0
  %v126 = vadd.f32 %v124, %v125
  %v127 = vsel %vm68, %v106, 0.0
  %v128 = vadd.f32 %v126, %v127
  %v129 = vsel %vm68, %v107, 0.0
  %v130 = vadd.f32 %v128, %v129
  %v131 = vsel %vm68, %v108, 0.0
  %v132 = vadd.f32 %v130, %v131
  %v133 = vsel %vm68, %v109, 0.0
  %v134 = vadd.f32 %v132, %v133
  %v135 = vsel %vm68, %v110, 0.0
  %v136 = vadd.f32 %v134, %v135
  %v137 = vsel %vm68, %v111, 0.0
  %v138 = vadd.f32 %v136, %v137
  %v139 = vsel %vm68, %v112, 0.0
  %v140 = vadd.f32 %v138, %v139
  %v141 = vsel %vm68, %v113, 0.0
  %v142 = vadd.f32 %v140, %v141
  %v143 = vsel %vm68, %v114, 0.0
  %v144 = vadd.f32 %v142, %v143
  %v145 = vsel %vm68, %v115, 0.0
  %v146 = vadd.f32 %v144, %v145
  %v147 = vmul.f32 %v99, 0.03125
  %v148 = vmul.f32 %v146, 0.03125
  %v149 = vmul.f32 %v147, %v147
  %v150 = vsub.f32 %v148, %v149
  %v151 = vmax.f32 %v150, 0.0
  %v152 = vld [vmem:[%s3] sm:$0x1]
  %v153 = vadd.f32 %v151, 1e-05
  %v154 = vrsqrt.pop %v153
  %v155 = vmul.f32 %v154, %v153
  %v156 = vmul.f32 %v155, %v154
  %v157 = vmul.f32 0.5, %v156
  %v158 = vsub.f32 1.5, %v157
  %v159 = vmul.f32 %v154, %v158
  %vm160 = vweird.f32 %v153
  %vm161 = vweird.f32 %v154
  %vm162 = vmor %vm160, %vm161
  %v163 = vsel %vm162, %v154, %v159
  %v164 = vmul.f32 %v152, %v163
  %v165 = vld [vmem:[%s4] sm:$0x1]
  %v166 = vmul.f32 %v147, %v164
  %v167 = vsub.f32 %v165, %v166
  %v169 = vperm.slane %v164, 0
  %v171 = vmul.f32 %v36, %v169
  %v172 = vmul.f32 %v37, %v169
  %v173 = vmul.f32 %v38, %v169
  %v174 = vmul.f32 %v39, %v169
  %v175 = vmul.f32 %v40, %v169
  %v176 = vmul.f32 %v41, %v169
  %v177 = vmul.f32 %v42, %v169
  %v178 = vmul.f32 %v43, %v169
  %v179 = vmul.f32 %v44, %v169
  %v180 = vmul.f32 %v45, %v169
  %v181 = vmul.f32 %v46, %v169
  %v182 = vmul.f32 %v47, %v169
  %v183 = vmul.f32 %v48, %v169
  %v184 = vmul.f32 %v49, %v169
  %v185 = vmul.f32 %v50, %v169
  %v186 = vmul.f32 %v51, %v169
  %v188 = vperm.slane %v167, 0
  %v190 = vadd.f32 %v171, %v188
  %v191 = vadd.f32 %v172, %v188
  %v192 = vadd.f32 %v173, %v188
  %v193 = vadd.f32 %v174, %v188
  %v194 = vadd.f32 %v175, %v188
  %v195 = vadd.f32 %v176, %v188
  %v196 = vadd.f32 %v177, %v188
  %v197 = vadd.f32 %v178, %v188
  %v198 = vadd.f32 %v179, %v188
  %v199 = vadd.f32 %v180, %v188
  %v200 = vadd.f32 %v181, %v188
  %v201 = vadd.f32 %v182, %v188
  %v202 = vadd.f32 %v183, %v188
  %v203 = vadd.f32 %v184, %v188
  %v204 = vadd.f32 %v185, %v188
  %v205 = vadd.f32 %v186, %v188
  %v206 = vmax.f32 %v190, 0.0
  %v207 = vmax.f32 %v191, 0.0
  %v208 = vmax.f32 %v192, 0.0
  %v209 = vmax.f32 %v193, 0.0
  %v210 = vmax.f32 %v194, 0.0
  %v211 = vmax.f32 %v195, 0.0
  %v212 = vmax.f32 %v196, 0.0
  %v213 = vmax.f32 %v197, 0.0
  %v214 = vmax.f32 %v198, 0.0
  %v215 = vmax.f32 %v199, 0.0
  %v216 = vmax.f32 %v200, 0.0
  %v217 = vmax.f32 %v201, 0.0
  %v218 = vmax.f32 %v202, 0.0
  %v219 = vmax.f32 %v203, 0.0
  %v220 = vmax.f32 %v204, 0.0
  %v221 = vmax.f32 %v205, 0.0
  %v222 = vpack.c.bf16 %v206, %v206
  %v223 = vpack.c.bf16 %v207, %v207
  %v224 = vpack.c.bf16 %v208, %v208
  %v225 = vpack.c.bf16 %v209, %v209
  %v226 = vpack.c.bf16 %v210, %v210
  %v227 = vpack.c.bf16 %v211, %v211
  %v228 = vpack.c.bf16 %v212, %v212
  %v229 = vpack.c.bf16 %v213, %v213
  %v230 = vpack.c.bf16 %v214, %v214
  %v231 = vpack.c.bf16 %v215, %v215
  %v232 = vpack.c.bf16 %v216, %v216
  %v233 = vpack.c.bf16 %v217, %v217
  %v234 = vpack.c.bf16 %v218, %v218
  %v235 = vpack.c.bf16 %v219, %v219
  %v236 = vpack.c.bf16 %v220, %v220
  %v237 = vpack.c.bf16 %v221, %v221
  %vm238 = vcmask 125952
  %239 = vst.msk [vmem:[%s5] sm:$0xf] %vm238, %v222
  %240 = vst.msk [vmem:[%s5 + $0x4] sm:$0xf] %vm238, %v223
  %241 = vst.msk [vmem:[%s5 + $0x8] sm:$0xf] %vm238, %v224
  %242 = vst.msk [vmem:[%s5 + $0xc] sm:$0xf] %vm238, %v225
  %243 = vst.msk [vmem:[%s5 + $0x10] sm:$0xf] %vm238, %v226
  %244 = vst.msk [vmem:[%s5 + $0x14] sm:$0xf] %vm238, %v227
  %245 = vst.msk [vmem:[%s5 + $0x18] sm:$0xf] %vm238, %v228
  %246 = vst.msk [vmem:[%s5 + $0x1c] sm:$0xf] %vm238, %v229
  %247 = vst.msk [vmem:[%s5 + $0x20] sm:$0xf] %vm238, %v230
  %248 = vst.msk [vmem:[%s5 + $0x24] sm:$0xf] %vm238, %v231
  %249 = vst.msk [vmem:[%s5 + $0x28] sm:$0xf] %vm238, %v232
  %250 = vst.msk [vmem:[%s5 + $0x2c] sm:$0xf] %vm238, %v233
  %251 = vst.msk [vmem:[%s5 + $0x30] sm:$0xf] %vm238, %v234
  %252 = vst.msk [vmem:[%s5 + $0x34] sm:$0xf] %vm238, %v235
  %253 = vst.msk [vmem:[%s5 + $0x38] sm:$0xf] %vm238, %v236
  %254 = vst.msk [vmem:[%s5 + $0x3c] sm:$0xf] %vm238, %v237
  // Predicated region
  $region22: #{a_call__.6} parent=0 // pred_check
    _
  $region23: #{a_call__.6} parent=0 // pred_check_branch
    %256 = sbr.rel (0) target = $region25
  $region24: #{a_call__.6} parent=0 // pred_region
    _
  $region25: #{a_call__.6} parent=0 // pred_fallthru
    _
  // Predicated region
  $region26: #{a_call__.6} parent=0 // pred_check
    _
  $region27: #{a_call__.6} parent=0 // pred_check_branch
    %258 = sbr.rel (0) target = $region29
  $region28: #{a_call__.6} parent=0 // pred_region
    _
  $region29: #{a_call__.6} parent=0 // pred_fallthru
    _

// kernel: a_call__.8
$region0: #{a_call__.8}
  #allocation0 [shape = 'u32[]', space=smem, size = 0x4, offset = 0x4, fixed_abs, tag = 'smem constant byte address 0x4 - core index']
  #allocation1 [shape = 'u32[72,128]{1,0:T(1,128)}', space=vmem, size = 0x9000, scoped, tag = 'internal scratch']
  %s0 = inlined_call_operand.vmem [shape: bf16[128,128], index: 0, kind: input, shape index: {}]
  %s1 = inlined_call_operand.vmem [shape: f32[4,1,128], index: 1, kind: input, shape index: {}]
  %s2 = inlined_call_operand.vmem [shape: f32[4,1,128], index: 2, kind: input, shape index: {}]
  %s3 = inlined_call_operand.vmem [shape: f32[1,128], index: 3, kind: input, shape index: {}]
  %s4 = inlined_call_operand.vmem [shape: f32[1,128], index: 4, kind: input, shape index: {}]
  %s5 = inlined_call_operand.vmem [shape: bf16[128,128], index: 5, kind: output, shape index: {}]
  %s6 = sld [smem:[#allocation0]]
  $region30: #{a_call__.8} parent=0
    _
  %s8 = ssub.s32 1, %s6
  %s9 = scalar_select 0, %s8, %s6
  // Predicated region
  $region2: #{a_call__.8} parent=0 // pred_check
    _
  $region3: #{a_call__.8} parent=0 // pred_check_branch
    %11 = sbr.rel (0) target = $region5
  $region4: #{a_call__.8} parent=0 // pred_region
    _
  $region5: #{a_call__.8} parent=0 // pred_fallthru
    _
  // Predicated region
  $region6: #{a_call__.8} parent=0 // pred_check
    _
  $region7: #{a_call__.8} parent=0 // pred_check_branch
    %13 = sbr.rel (0) target = $region9
  $region8: #{a_call__.8} parent=0 // pred_region
    _
  $region9: #{a_call__.8} parent=0 // pred_fallthru
    _
  // Predicated region
  $region10: #{a_call__.8} parent=0 // pred_check
    _
  $region11: #{a_call__.8} parent=0 // pred_check_branch
    %15 = sbr.rel (0) target = $region13
  $region12: #{a_call__.8} parent=0 // pred_region
    _
  $region13: #{a_call__.8} parent=0 // pred_fallthru
    _
  // Predicated region
  $region14: #{a_call__.8} parent=0 // pred_check
    _
  $region15: #{a_call__.8} parent=0 // pred_check_branch
    %17 = sbr.rel (0) target = $region17
  $region16: #{a_call__.8} parent=0 // pred_region
    _
  $region17: #{a_call__.8} parent=0 // pred_fallthru
    _
  // Predicated region
  $region18: #{a_call__.8} parent=0 // pred_check
    _
  $region19: #{a_call__.8} parent=0 // pred_check_branch
    %19 = sbr.rel (0) target = $region21
  $region20: #{a_call__.8} parent=0 // pred_region
    _
  $region21: #{a_call__.8} parent=0 // pred_fallthru
    _
  %v20 = vld [vmem:[%s0] sm:$0xf]
  %v21 = vld [vmem:[%s0 + $0x4] sm:$0xf]
  %v22 = vld [vmem:[%s0 + $0x8] sm:$0xf]
  %v23 = vld [vmem:[%s0 + $0xc] sm:$0xf]
  %v24 = vld [vmem:[%s0 + $0x10] sm:$0xf]
  %v25 = vld [vmem:[%s0 + $0x14] sm:$0xf]
  %v26 = vld [vmem:[%s0 + $0x18] sm:$0xf]
  %v27 = vld [vmem:[%s0 + $0x1c] sm:$0xf]
  %v28 = vld [vmem:[%s0 + $0x20] sm:$0xf]
  %v29 = vld [vmem:[%s0 + $0x24] sm:$0xf]
  %v30 = vld [vmem:[%s0 + $0x28] sm:$0xf]
  %v31 = vld [vmem:[%s0 + $0x2c] sm:$0xf]
  %v32 = vld [vmem:[%s0 + $0x30] sm:$0xf]
  %v33 = vld [vmem:[%s0 + $0x34] sm:$0xf]
  %v34 = vld [vmem:[%s0 + $0x38] sm:$0xf]
  %v35 = vld [vmem:[%s0 + $0x3c] sm:$0xf]
  %v36 = vunpack.c.l.bf16 %v20
  %v37 = vunpack.c.l.bf16 %v21
  %v38 = vunpack.c.l.bf16 %v22
  %v39 = vunpack.c.l.bf16 %v23
  %v40 = vunpack.c.l.bf16 %v24
  %v41 = vunpack.c.l.bf16 %v25
  %v42 = vunpack.c.l.bf16 %v26
  %v43 = vunpack.c.l.bf16 %v27
  %v44 = vunpack.c.l.bf16 %v28
  %v45 = vunpack.c.l.bf16 %v29
  %v46 = vunpack.c.l.bf16 %v30
  %v47 = vunpack.c.l.bf16 %v31
  %v48 = vunpack.c.l.bf16 %v32
  %v49 = vunpack.c.l.bf16 %v33
  %v50 = vunpack.c.l.bf16 %v34
  %v51 = vunpack.c.l.bf16 %v35
  %v52 = vld [vmem:[%s1] sm:$0x1]
  %v53 = vld [vmem:[%s1 + $0x1] sm:$0x1]
  %v54 = vld [vmem:[%s1 + $0x2] sm:$0x1]
  %v55 = vld [vmem:[%s1 + $0x3] sm:$0x1]
  %vm56 = vcmask 1040384
  %v57 = vsel %vm56, %v52, 0.0
  %v58 = vsel %vm56, %v53, 0.0
  %v59 = vadd.f32 %v57, %v58
  %v60 = vsel %vm56, %v54, 0.0
  %v61 = vadd.f32 %v59, %v60
  %v62 = vsel %vm56, %v55, 0.0
  %v63 = vadd.f32 %v61, %v62
  %v64 = vld [vmem:[%s2] sm:$0x1]
  %v65 = vld [vmem:[%s2 + $0x1] sm:$0x1]
  %v66 = vld [vmem:[%s2 + $0x2] sm:$0x1]
  %v67 = vld [vmem:[%s2 + $0x3] sm:$0x1]
  %v68 = vsel %vm56, %v64, 0.0
  %v69 = vsel %vm56, %v65, 0.0
  %v70 = vadd.f32 %v68, %v69
  %v71 = vsel %vm56, %v66, 0.0
  %v72 = vadd.f32 %v70, %v71
  %v73 = vsel %vm56, %v67, 0.0
  %v74 = vadd.f32 %v72, %v73
  %v75 = vmul.f32 %v63, 0.0078125
  %v76 = vmul.f32 %v74, 0.0078125
  %v77 = vmul.f32 %v75, %v75
  %v78 = vsub.f32 %v76, %v77
  %v79 = vmax.f32 %v78, 0.0
  %v80 = vld [vmem:[%s3] sm:$0x1]
  %v81 = vadd.f32 %v79, 1e-05
  %v82 = vrsqrt.pop %v81
  %v83 = vmul.f32 %v82, %v81
  %v84 = vmul.f32 %v83, %v82
  %v85 = vmul.f32 0.5, %v84
  %v86 = vsub.f32 1.5, %v85
  %v87 = vmul.f32 %v82, %v86
  %vm88 = vweird.f32 %v81
  %vm89 = vweird.f32 %v82
  %vm90 = vmor %vm88, %vm89
  %v91 = vsel %vm90, %v82, %v87
  %v92 = vmul.f32 %v80, %v91
  %v93 = vld [vmem:[%s4] sm:$0x1]
  %v94 = vmul.f32 %v75, %v92
  %v95 = vsub.f32 %v93, %v94
  %v97 = vperm.slane %v92, 0
  %v99 = vmul.f32 %v36, %v97
  %v100 = vmul.f32 %v37, %v97
  %v101 = vmul.f32 %v38, %v97
  %v102 = vmul.f32 %v39, %v97
  %v103 = vmul.f32 %v40, %v97
  %v104 = vmul.f32 %v41, %v97
  %v105 = vmul.f32 %v42, %v97
  %v106 = vmul.f32 %v43, %v97
  %v107 = vmul.f32 %v44, %v97
  %v108 = vmul.f32 %v45, %v97
  %v109 = vmul.f32 %v46, %v97
  %v110 = vmul.f32 %v47, %v97
  %v111 = vmul.f32 %v48, %v97
  %v112 = vmul.f32 %v49, %v97
  %v113 = vmul.f32 %v50, %v97
  %v114 = vmul.f32 %v51, %v97
  %v116 = vperm.slane %v95, 0
  %v118 = vadd.f32 %v99, %v116
  %v119 = vadd.f32 %v100, %v116
  %v120 = vadd.f32 %v101, %v116
  %v121 = vadd.f32 %v102, %v116
  %v122 = vadd.f32 %v103, %v116
  %v123 = vadd.f32 %v104, %v116
  %v124 = vadd.f32 %v105, %v116
  %v125 = vadd.f32 %v106, %v116
  %v126 = vadd.f32 %v107, %v116
  %v127 = vadd.f32 %v108, %v116
  %v128 = vadd.f32 %v109, %v116
  %v129 = vadd.f32 %v110, %v116
  %v130 = vadd.f32 %v111, %v116
  %v131 = vadd.f32 %v112, %v116
  %v132 = vadd.f32 %v113, %v116
  %v133 = vadd.f32 %v114, %v116
  %v134 = vmax.f32 %v118, 0.0
  %v135 = vmax.f32 %v119, 0.0
  %v136 = vmax.f32 %v120, 0.0
  %v137 = vmax.f32 %v121, 0.0
  %v138 = vmax.f32 %v122, 0.0
  %v139 = vmax.f32 %v123, 0.0
  %v140 = vmax.f32 %v124, 0.0
  %v141 = vmax.f32 %v125, 0.0
  %v142 = vmax.f32 %v126, 0.0
  %v143 = vmax.f32 %v127, 0.0
  %v144 = vmax.f32 %v128, 0.0
  %v145 = vmax.f32 %v129, 0.0
  %v146 = vmax.f32 %v130, 0.0
  %v147 = vmax.f32 %v131, 0.0
  %v148 = vmax.f32 %v132, 0.0
  %v149 = vmax.f32 %v133, 0.0
  %v150 = vpack.c.bf16 %v134, %v134
  %v151 = vpack.c.bf16 %v135, %v135
  %v152 = vpack.c.bf16 %v136, %v136
  %v153 = vpack.c.bf16 %v137, %v137
  %v154 = vpack.c.bf16 %v138, %v138
  %v155 = vpack.c.bf16 %v139, %v139
  %v156 = vpack.c.bf16 %v140, %v140
  %v157 = vpack.c.bf16 %v141, %v141
  %v158 = vpack.c.bf16 %v142, %v142
  %v159 = vpack.c.bf16 %v143, %v143
  %v160 = vpack.c.bf16 %v144, %v144
  %v161 = vpack.c.bf16 %v145, %v145
  %v162 = vpack.c.bf16 %v146, %v146
  %v163 = vpack.c.bf16 %v147, %v147
  %v164 = vpack.c.bf16 %v148, %v148
  %v165 = vpack.c.bf16 %v149, %v149
  %166 = vst [vmem:[%s5] sm:$0xf] %v150
  %167 = vst [vmem:[%s5 + $0x4] sm:$0xf] %v151
  %168 = vst [vmem:[%s5 + $0x8] sm:$0xf] %v152
  %169 = vst [vmem:[%s5 + $0xc] sm:$0xf] %v153
  %170 = vst [vmem:[%s5 + $0x10] sm:$0xf] %v154
  %171 = vst [vmem:[%s5 + $0x14] sm:$0xf] %v155
  %172 = vst [vmem:[%s5 + $0x18] sm:$0xf] %v156
  %173 = vst [vmem:[%s5 + $0x1c] sm:$0xf] %v157
  %174 = vst [vmem:[%s5 + $0x20] sm:$0xf] %v158
  %175 = vst [vmem:[%s5 + $0x24] sm:$0xf] %v159
  %176 = vst [vmem:[%s5 + $0x28] sm:$0xf] %v160
  %177 = vst [vmem:[%s5 + $0x2c] sm:$0xf] %v161
  %178 = vst [vmem:[%s5 + $0x30] sm:$0xf] %v162
  %179 = vst [vmem:[%s5 + $0x34] sm:$0xf] %v163
  %180 = vst [vmem:[%s5 + $0x38] sm:$0xf] %v164
  %181 = vst [vmem:[%s5 + $0x3c] sm:$0xf] %v165
  // Predicated region
  $region22: #{a_call__.8} parent=0 // pred_check
    _
  $region23: #{a_call__.8} parent=0 // pred_check_branch
    %183 = sbr.rel (0) target = $region25
  $region24: #{a_call__.8} parent=0 // pred_region
    _
  $region25: #{a_call__.8} parent=0 // pred_fallthru
    _
  // Predicated region
  $region26: #{a_call__.8} parent=0 // pred_check
    _
  $region27: #{a_call__.8} parent=0 // pred_check_branch
    %185 = sbr.rel (0) target = $region29
  $region28: #{a_call__.8} parent=0 // pred_region
    _
  $region29: #{a_call__.8} parent=0 // pred_fallthru
    _

// kernel: a_call__.7
$region0: #{a_call__.7}
  #allocation0 [shape = 'u32[]', space=smem, size = 0x4, offset = 0x4, fixed_abs, tag = 'smem constant byte address 0x4 - core index']
  #allocation1 [shape = 'u32[72,128]{1,0:T(1,128)}', space=vmem, size = 0x9000, scoped, tag = 'internal scratch']
  %s0 = inlined_call_operand.vmem [shape: bf16[4,32,64], index: 0, kind: input, shape index: {}]
  %s1 = inlined_call_operand.vmem [shape: bf16[4,64,128], index: 1, kind: input, shape index: {}]
  %s2 = inlined_call_operand.vmem [shape: bf16[4,32,128], index: 2, kind: output, shape index: {0}]
  %s3 = inlined_call_operand.vmem [shape: f32[4,1,128], index: 3, kind: output, shape index: {1}]
  %s4 = inlined_call_operand.vmem [shape: f32[4,1,128], index: 4, kind: output, shape index: {2}]
  %5 = xla_tuple %s2, %s3, %s4
  %s6 = sld [smem:[#allocation0]]
  $region61: #{a_call__.7} parent=0
    _
  %s8 = ssub.s32 1, %s6
  %s9 = scalar_select 0, %s8, %s6
  loop: start=0, step=1, limit=6
  $region2: #{a_call__.7} parent=0 // loop_pre_header
    _
  $region3: #{a_call__.7} parent=0 // loop_header
    %s11 = sphi 0, %s15
    %p12 = scmp.ge.s32.totalorder %s11, 6
    %s18 = sphi 0, %s37
    %s19 = sphi 0, %s33
    %s20 = sphi 0, %s29
    %s21 = sphi 0, %s18
    %s22 = sphi 0, %s19
    %s23 = sphi 0, %s20
    %s24 = sphi 0, %s21
    %s25 = sphi 0, %s22
    %s26 = sphi 0, %s23
    %s42 = sphi 0, %s44
    %s45 = sphi 0, %s42
    %s46 = sphi 0, %s45
    %s62 = sphi 0, %s46
    %s70 = sphi 0, %s72
    %s73 = sphi 0, %s70
    %s74 = sphi 0, %s73
    %s90 = sphi 0, %s74
    %s100 = sphi 0, %s102
    %s103 = sphi 0, %s100
    %s104 = sphi 0, %s103
    %s120 = sphi 0, %s104
    %s128 = sphi 0, %s130
    %s131 = sphi 0, %s128
    %s132 = sphi 0, %s131
    %s148 = sphi 0, %s132
    %s156 = sphi 0, %s158
    %s159 = sphi 0, %s156
    %s160 = sphi 0, %s159
    %s176 = sphi 0, %s160
  $region4: #{a_call__.7} parent=0 // loop_header_branch
    %14 = sbr.rel (%p12) target = $region8
  $region5: #{a_call__.7} parent=0 // loop_body
    %s16 = ssub.s32 %s11, 1
    %s17 = ssub.s32 %s11, 2
    %s27 = sadd.s32 1, %s20
    %p28 = scmp.ge.s32.totalorder %s27, 1
    %s29 = scalar_select %p28, 0, %s27
    %s30 = sadd.s32 1, %s19
    %s31 = scalar_select %p28, %s30, %s19
    %p32 = scmp.ge.s32.totalorder %s31, 4
    %s33 = scalar_select %p32, 0, %s31
    %s34 = sadd.s32 1, %s18
    %s35 = scalar_select %p32, %s34, %s18
    %p36 = scmp.ge.s32.totalorder %s35, 1
    %s37 = scalar_select %p36, 0, %s35
    %s38 = ssub.s32 %s19, %s33
    %s39 = ssub.s32 %s20, %s29
    %s40 = sor.u32 %s38, %s39
    %p41 = scmp.eq.s32.totalorder %s40, 0
    %s43 = sadd.s32 %s42, 1
    %s44 = scalar_select %p41, %s42, %s43
    %p47 = pneg %p41
    %p48 = scmp.eq.s32.totalorder %s11, 3
    %p49 = por %p47, %p48
    %p50 = scmp.ne.s32.totalorder %s42, %s45
    %p51 = scmp.eq.s32.totalorder %s11, 0
    %p52 = por %p50, %p51
    %p53 = scmp.ne.s32.totalorder %s42, %s45
    %p54 = scmp.eq.s32.totalorder %s16, 3
    %p55 = por %p53, %p54
    %p56 = scmp.ne.s32.totalorder %s45, %s46
    %p57 = scmp.eq.s32.totalorder %s16, 0
    %p58 = por %p56, %p57
    %p59 = scmp.ne.s32.totalorder %s45, %s46
    %p60 = scmp.eq.s32.totalorder %s17, 3
    %p61 = por %p59, %p60
    %p63 = scmp.ne.s32.totalorder %s46, %s62
    %p64 = scmp.eq.s32.totalorder %s17, 0
    %p65 = por %p63, %p64
    %s66 = ssub.s32 %s19, %s33
    %s67 = ssub.s32 %s18, %s37
    %s68 = sor.u32 %s66, %s67
    %p69 = scmp.eq.s32.totalorder %s68, 0
    %s71 = sadd.s32 %s70, 1
    %s72 = scalar_select %p69, %s70, %s71
    %p75 = pneg %p69
    %p76 = scmp.eq.s32.totalorder %s11, 3
    %p77 = por %p75, %p76
    %p78 = scmp.ne.s32.totalorder %s70, %s73
    %p79 = scmp.eq.s32.totalorder %s11, 0
    %p80 = por %p78, %p79
    %p81 = scmp.ne.s32.totalorder %s70, %s73
    %p82 = scmp.eq.s32.totalorder %s16, 3
    %p83 = por %p81, %p82
    %p84 = scmp.ne.s32.totalorder %s73, %s74
    %p85 = scmp.eq.s32.totalorder %s16, 0
    %p86 = por %p84, %p85
    %p87 = scmp.ne.s32.totalorder %s73, %s74
    %p88 = scmp.eq.s32.totalorder %s17, 3
    %p89 = por %p87, %p88
    %p91 = scmp.ne.s32.totalorder %s74, %s90
    %p92 = scmp.eq.s32.totalorder %s17, 0
    %p93 = por %p91, %p92
    %s94 = ssub.s32 %s19, %s33
    %s95 = ssub.s32 %s20, %s29
    %s96 = sor.u32 %s94, %s95
    %s97 = ssub.s32 %s18, %s37
    %s98 = sor.u32 %s96, %s97
    %p99 = scmp.eq.s32.totalorder %s98, 0
    %s101 = sadd.s32 %s100, 1
    %s102 = scalar_select %p99, %s100, %s101
    %p105 = pneg %p99
    %p106 = scmp.eq.s32.totalorder %s11, 3
    %p107 = por %p105, %p106
    %p108 = scmp.ne.s32.totalorder %s100, %s103
    %p109 = scmp.eq.s32.totalorder %s11, 0
    %p110 = por %p108, %p109
    %p111 = scmp.ne.s32.totalorder %s100, %s103
    %p112 = scmp.eq.s32.totalorder %s16, 3
    %p113 = por %p111, %p112
    %p114 = scmp.ne.s32.totalorder %s103, %s104
    %p115 = scmp.eq.s32.totalorder %s16, 0
    %p116 = por %p114, %p115
    %p117 = scmp.ne.s32.totalorder %s103, %s104
    %p118 = scmp.eq.s32.totalorder %s17, 3
    %p119 = por %p117, %p118
    %p121 = scmp.ne.s32.totalorder %s104, %s120
    %p122 = scmp.eq.s32.totalorder %s17, 0
    %p123 = por %p121, %p122
    %s124 = ssub.s32 %s19, %s33
    %s125 = ssub.s32 %s18, %s37
    %s126 = sor.u32 %s124, %s125
    %p127 = scmp.eq.s32.totalorder %s126, 0
    %s129 = sadd.s32 %s128, 1
    %s130 = scalar_select %p127, %s128, %s129
    %p133 = pneg %p127
    %p134 = scmp.eq.s32.totalorder %s11, 3
    %p135 = por %p133, %p134
    %p136 = scmp.ne.s32.totalorder %s128, %s131
    %p137 = scmp.eq.s32.totalorder %s11, 0
    %p138 = por %p136, %p137
    %p139 = scmp.ne.s32.totalorder %s128, %s131
    %p140 = scmp.eq.s32.totalorder %s16, 3
    %p141 = por %p139, %p140
    %p142 = scmp.ne.s32.totalorder %s131, %s132
    %p143 = scmp.eq.s32.totalorder %s16, 0
    %p144 = por %p142, %p143
    %p145 = scmp.ne.s32.totalorder %s131, %s132
    %p146 = scmp.eq.s32.totalorder %s17, 3
    %p147 = por %p145, %p146
    %p149 = scmp.ne.s32.totalorder %s132, %s148
    %p150 = scmp.eq.s32.totalorder %s17, 0
    %p151 = por %p149, %p150
    %s152 = ssub.s32 %s19, %s33
    %s153 = ssub.s32 %s18, %s37
    %s154 = sor.u32 %s152, %s153
    %p155 = scmp.eq.s32.totalorder %s154, 0
    %s157 = sadd.s32 %s156, 1
    %s158 = scalar_select %p155, %s156, %s157
    %p161 = pneg %p155
    %p162 = scmp.eq.s32.totalorder %s11, 3
    %p163 = por %p161, %p162
    %p164 = scmp.ne.s32.totalorder %s156, %s159
    %p165 = scmp.eq.s32.totalorder %s11, 0
    %p166 = por %p164, %p165
    %p167 = scmp.ne.s32.totalorder %s156, %s159
    %p168 = scmp.eq.s32.totalorder %s16, 3
    %p169 = por %p167, %p168
    %p170 = scmp.ne.s32.totalorder %s159, %s160
    %p171 = scmp.eq.s32.totalorder %s16, 0
    %p172 = por %p170, %p171
    %p173 = scmp.ne.s32.totalorder %s159, %s160
    %p174 = scmp.eq.s32.totalorder %s17, 3
    %p175 = por %p173, %p174
    %p177 = scmp.ne.s32.totalorder %s160, %s176
    %p178 = scmp.eq.s32.totalorder %s17, 0
    %p179 = por %p177, %p178
    %p180 = scmp.le.s32.totalorder 1, %s11
    %p181 = scmp.lt.s32.totalorder %s11, 5
    %p182 = pnand %p180, %p181
    %p183 = pneg %p182
    // Predicated region
    $region9: #{a_call__.7} parent=5 // pred_check
      _
    $region10: #{a_call__.7} parent=5 // pred_check_branch
      %185 = sbr.rel (%p182) target = $region12
    $region11: #{a_call__.7} parent=5 // pred_region
      %s186 = ssub.s32 %s11, 1
    $region12: #{a_call__.7} parent=5 // pred_fallthru
      _
    %p187 = scmp.lt.s32.totalorder %s11, 4
    // Predicated region
    $region13: #{a_call__.7} parent=5 // pred_check
      %p188 = pneg %p187
    $region14: #{a_call__.7} parent=5 // pred_check_branch
      %190 = sbr.rel (%p188) target = $region16
    $region15: #{a_call__.7} parent=5 // pred_region
      // Predicated region
      $region17: #{a_call__.7} parent=15 // pred_check
        %p191 = pneg %p52
      $region18: #{a_call__.7} parent=15 // pred_check_branch
        %193 = sbr.rel (%p191) target = $region20
      $region19: #{a_call__.7} parent=15 // pred_region
        %s194 = smul.u32 4, %s20
        %p195 = scmp.lt.s32.totalorder %s19, 3
        %s196 = scalar_select %p195, %s19, 3
        %p197 = scmp.lt.s32.totalorder %s194, 3
        %s198 = scalar_select %p197, %s194, 3
        %s199 = smul.addr %s196, 4
        %s200 = sadd.s32 %s198, %s199
        %s201 = smul.addr %s200, 4
        %s202 = scalar_lea.vmem %s0, %s201
        %s203 = smul.u32 4, %s20
      $region20: #{a_call__.7} parent=15 // pred_fallthru
        _
      // Predicated region
      $region21: #{a_call__.7} parent=15 // pred_check
        %p204 = pneg %p80
      $region22: #{a_call__.7} parent=15 // pred_check_branch
        %206 = sbr.rel (%p204) target = $region24
      $region23: #{a_call__.7} parent=15 // pred_region
        %p207 = scmp.lt.s32.totalorder %s19, 3
        %s208 = scalar_select %p207, %s19, 3
        %p209 = scmp.lt.s32.totalorder %s18, 0
        %s210 = scalar_select %p209, %s18, 0
        %s211 = smul.addr %s208, 8
        %s212 = sadd.s32 %s210, %s211
        %s213 = smul.addr %s212, 4
        %s214 = scalar_lea.vmem %s1, %s213
      $region24: #{a_call__.7} parent=15 // pred_fallthru
        _
    $region16: #{a_call__.7} parent=5 // pred_fallthru
      _
    %p215 = scmp.le.s32.totalorder 1, %s11
    %p216 = scmp.lt.s32.totalorder %s11, 5
    %p217 = pnand %p215, %p216
    %p218 = pneg %p217
    // Predicated region
    $region25: #{a_call__.7} parent=5 // pred_check
      _
    $region26: #{a_call__.7} parent=5 // pred_check_branch
      %220 = sbr.rel (%p217) target = $region28
    $region27: #{a_call__.7} parent=5 // pred_region
      %s221 = ssub.s32 %s11, 1
      %s222 = smul.u32 4, %s23
      %p223 = scmp.lt.s32.totalorder %s22, 3
      %s224 = scalar_select %p223, %s22, 3
      %p225 = scmp.lt.s32.totalorder %s222, 3
      %s226 = scalar_select %p225, %s222, 3
      %s227 = smul.addr %s224, 4
      %s228 = sadd.s32 %s226, %s227
      %s229 = smul.addr %s228, 4
      %s230 = scalar_lea.vmem %s0, %s229
      %p231 = pneg %p58
      %p232 = pneg %p55
      %p233 = scmp.lt.s32.totalorder %s22, 3
      %s234 = scalar_select %p233, %s22, 3
      %p235 = scmp.lt.s32.totalorder %s21, 0
      %s236 = scalar_select %p235, %s21, 0
      %s237 = smul.addr %s234, 8
      %s238 = sadd.s32 %s236, %s237
      %s239 = smul.addr %s238, 4
      %s240 = scalar_lea.vmem %s1, %s239
      %p241 = pneg %p86
      %p242 = pneg %p83
      %p243 = pneg %p116
      %p244 = pneg %p113
      %s245 = smul.u32 4, %s23
      %p246 = scmp.lt.s32.totalorder %s22, 3
      %s247 = scalar_select %p246, %s22, 3
      %p248 = scmp.lt.s32.totalorder %s245, 3
      %s249 = scalar_select %p248, %s245, 3
      %p250 = scmp.lt.s32.totalorder %s21, 0
      %s251 = scalar_select %p250, %s21, 0
      %s252 = sadd.s32 %s251, %s249
      %s253 = smul.addr %s247, 4
      %s254 = sadd.s32 %s252, %s253
      %s255 = smul.addr %s254, 4
      %s256 = scalar_lea.vmem %s2, %s255
      %p257 = pneg %p144
      %p258 = pneg %p141
      %p259 = scmp.lt.s32.totalorder %s22, 3
      %s260 = scalar_select %p259, %s22, 3
      %p261 = scmp.lt.s32.totalorder %s21, 0
      %s262 = scalar_select %p261, %s21, 0
      %s263 = sadd.s32 %s262, %s260
      %s264 = scalar_lea.vmem %s3, %s263
      %p265 = pneg %p172
      %p266 = pneg %p169
      %p267 = scmp.lt.s32.totalorder %s22, 3
      %s268 = scalar_select %p267, %s22, 3
      %p269 = scmp.lt.s32.totalorder %s21, 0
      %s270 = scalar_select %p269, %s21, 0
      %s271 = sadd.s32 %s270, %s268
      %s272 = scalar_lea.vmem %s4, %s271
      %s273 = smul.u32 4, %s23
      %p274 = scmp.lt.s32.totalorder %s22, 3
      %s275 = scalar_select %p274, %s22, 3
      %p276 = scmp.lt.s32.totalorder %s273, 3
      %s277 = scalar_select %p276, %s273, 3
      %s278 = smul.addr %s275, 4
      %s279 = sadd.s32 %s277, %s278
      %s280 = smul.addr %s279, 4
      %s281 = scalar_lea.vmem %s0, %s280
      %s282 = smul.u32 4, %s23
      %p283 = scmp.lt.s32.totalorder %s22, 3
      %s284 = scalar_select %p283, %s22, 3
      %p285 = scmp.lt.s32.totalorder %s21, 0
      %s286 = scalar_select %p285, %s21, 0
      %s287 = smul.addr %s284, 8
      %s288 = sadd.s32 %s286, %s287
      %s289 = smul.addr %s288, 4
      %s290 = scalar_lea.vmem %s1, %s289
      %s291 = smul.u32 4, %s23
      %p292 = scmp.lt.s32.totalorder %s22, 3
      %s293 = scalar_select %p292, %s22, 3
      %p294 = scmp.lt.s32.totalorder %s291, 3
      %s295 = scalar_select %p294, %s291, 3
      %p296 = scmp.lt.s32.totalorder %s21, 0
      %s297 = scalar_select %p296, %s21, 0
      %s298 = sadd.s32 %s297, %s295
      %s299 = smul.addr %s293, 4
      %s300 = sadd.s32 %s298, %s299
      %s301 = smul.addr %s300, 4
      %s302 = scalar_lea.vmem %s2, %s301
      %s303 = smul.u32 4, %s23
      %p304 = scmp.lt.s32.totalorder %s22, 3
      %s305 = scalar_select %p304, %s22, 3
      %p306 = scmp.lt.s32.totalorder %s21, 0
      %s307 = scalar_select %p306, %s21, 0
      %s308 = sadd.s32 %s307, %s305
      %s309 = scalar_lea.vmem %s3, %s308
      %p310 = scmp.lt.s32.totalorder %s22, 3
      %s311 = scalar_select %p310, %s22, 3
      %p312 = scmp.lt.s32.totalorder %s21, 0
      %s313 = scalar_select %p312, %s21, 0
      %s314 = sadd.s32 %s313, %s311
      %s315 = scalar_lea.vmem %s4, %s314
      %p317 = scmp.eq.s32.totalorder %s23, 0
      // Predicated region
      $region29: #{a_call__.7} parent=27 // pred_check
        %p318 = pneg %p317
      $region30: #{a_call__.7} parent=27 // pred_check_branch
        %320 = sbr.rel (%p318) target = $region32
      $region31: #{a_call__.7} parent=27 // pred_region
        %321 = vst [vmem:[%s309] sm:$0x1] 0.0
        %322 = vst [vmem:[%s315] sm:$0x1] 0.0
      $region32: #{a_call__.7} parent=27 // pred_fallthru
        _
      %v323 = vld [vmem:[%s281] sm:$0xf]
      %v324 = vld [vmem:[%s281 + $0x4] sm:$0xf]
      %v325 = vld [vmem:[%s281 + $0x8] sm:$0xf]
      %v326 = vld [vmem:[%s281 + $0xc] sm:$0xf]
      %v327 = vld [vmem:[%s290] sm:$0xf]
      %v328 = vld [vmem:[%s290 + $0x4] sm:$0xf]
      %v329 = vld [vmem:[%s290 + $0x8] sm:$0xf]
      %v330 = vld [vmem:[%s290 + $0xc] sm:$0xf]
      %v331 = vld [vmem:[%s290 + $0x10] sm:$0xf]
      %v332 = vld [vmem:[%s290 + $0x14] sm:$0xf]
      %v333 = vld [vmem:[%s290 + $0x18] sm:$0xf]
      %v334 = vld [vmem:[%s290 + $0x1c] sm:$0xf]
      %v339 = vunpack.c.l.b16 %v323
      %v340 = vunpack.c.l.b16 %v324
      %v341 = vunpack.c.l.b16 %v325
      %v342 = vunpack.c.l.b16 %v326
      %v343 = vpack.c.b16 %v340, %v339
      %v344 = vpack.c.b16 %v342, %v341
      %v353 = vunpack.c.l.b16 %v327
      %v354 = vunpack.c.l.b16 %v328
      %v355 = vunpack.c.l.b16 %v329
      %v356 = vunpack.c.l.b16 %v330
      %v357 = vunpack.c.l.b16 %v331
      %v358 = vunpack.c.l.b16 %v332
      %v359 = vunpack.c.l.b16 %v333
      %v360 = vunpack.c.l.b16 %v334
      %v361 = vpack.c.b16 %v354, %v353
      %v362 = vpack.c.b16 %v356, %v355
      %v363 = vpack.c.b16 %v358, %v357
      %v364 = vpack.c.b16 %v360, %v359
      %vm369 = vcmask 523264
      %v371 = vsel %vm369, %v343, 0
      %v374 = vsel %vm369, %v344, 0
      %376 = vmatpush.bf16.msra.mxu0 0
      %377 = vmatpush.bf16.msra.mxu0 0
      %378 = vmatpush.bf16.msra.mxu0 0
      %379 = vmatpush.bf16.msra.mxu0 0
      %380 = vmatpush.bf16.msra.mxu0 %v364
      %381 = vmatpush.bf16.msra.mxu0 %v363
      %382 = vmatpush.bf16.msra.mxu0 %v362
      %383 = vmatpush.bf16.msra.mxu0 %v361
      %384 = vmatmul.bf16.gmra.mxu0 %v371
      %v385 = vpop.f32.mrf.mxu0
      %v386 = vadd.f32 0.0, %v385
      %v387 = vpop.f32.mrf.mxu0
      %v388 = vadd.f32 0.0, %v387
      %389 = vmatmul.bf16.gmra.mxu0 %v374
      %v390 = vpop.f32.mrf.mxu0
      %v391 = vadd.f32 0.0, %v390
      %v392 = vpop.f32.mrf.mxu0
      %v393 = vadd.f32 0.0, %v392
      %394 = vdwg.mxu0
      %v395 = vpack.c.bf16 %v386, %v386
      %v396 = vpack.c.bf16 %v388, %v388
      %v397 = vpack.c.bf16 %v391, %v391
      %v398 = vpack.c.bf16 %v393, %v393
      %399 = vst [vmem:[%s302] sm:$0xf] %v395
      %400 = vst [vmem:[%s302 + $0x4] sm:$0xf] %v396
      %401 = vst [vmem:[%s302 + $0x8] sm:$0xf] %v397
      %402 = vst [vmem:[%s302 + $0xc] sm:$0xf] %v398
      %v403 = vld [vmem:[%s309] sm:$0x1]
      %v404 = vadd.f32 %v386, %v388
      %v405 = vadd.f32 %v404, %v391
      %v406 = vadd.f32 %v405, %v393
      %v407 = vrot.slane %v406, 4
      %v408 = vadd.f32 %v406, %v407
      %v409 = vrot.slane %v408, 2
      %v410 = vadd.f32 %v408, %v409
      %v411 = vrot.slane %v410, 1
      %v412 = vadd.f32 %v410, %v411
      %v413 = vadd.f32 %v403, %v412
      %414 = vst [vmem:[%s309] sm:$0x1] %v413
      %v415 = vld [vmem:[%s315] sm:$0x1]
      %v416 = vmul.f32 %v386, %v386
      %v417 = vmul.f32 %v388, %v388
      %v418 = vmul.f32 %v391, %v391
      %v419 = vmul.f32 %v393, %v393
      %v420 = vadd.f32 %v416, %v417
      %v421 = vadd.f32 %v420, %v418
      %v422 = vadd.f32 %v421, %v419
      %v423 = vrot.slane %v422, 4
      %v424 = vadd.f32 %v422, %v423
      %v425 = vrot.slane %v424, 2
      %v426 = vadd.f32 %v424, %v425
      %v427 = vrot.slane %v426, 1
      %v428 = vadd.f32 %v426, %v427
      %v429 = vadd.f32 %v415, %v428
      %430 = vst [vmem:[%s315] sm:$0x1] %v429
      %s431 = smul.u32 4, %s23
      %p432 = scmp.lt.s32.totalorder %s22, 3
      %s433 = scalar_select %p432, %s22, 3
      %p434 = scmp.lt.s32.totalorder %s431, 3
      %s435 = scalar_select %p434, %s431, 3
      %p436 = scmp.lt.s32.totalorder %s21, 0
      %s437 = scalar_select %p436, %s21, 0
      %s438 = sadd.s32 %s437, %s435
      %s439 = smul.addr %s433, 4
      %s440 = sadd.s32 %s438, %s439
      %s441 = smul.addr %s440, 4
      %s442 = scalar_lea.vmem %s2, %s441
      %p443 = scmp.lt.s32.totalorder %s22, 3
      %s444 = scalar_select %p443, %s22, 3
      %p445 = scmp.lt.s32.totalorder %s21, 0
      %s446 = scalar_select %p445, %s21, 0
      %s447 = sadd.s32 %s446, %s444
      %s448 = scalar_lea.vmem %s3, %s447
      %p449 = scmp.lt.s32.totalorder %s22, 3
      %s450 = scalar_select %p449, %s22, 3
      %p451 = scmp.lt.s32.totalorder %s21, 0
      %s452 = scalar_select %p451, %s21, 0
      %s453 = sadd.s32 %s452, %s450
      %s454 = scalar_lea.vmem %s4, %s453
      // Predicated region
      $region33: #{a_call__.7} parent=27 // pred_check
        %p455 = pneg %p113
      $region34: #{a_call__.7} parent=27 // pred_check_branch
        %457 = sbr.rel (%p455) target = $region36
      $region35: #{a_call__.7} parent=27 // pred_region
        %s458 = smul.u32 4, %s23
      $region36: #{a_call__.7} parent=27 // pred_fallthru
        _
      // Predicated region
      $region37: #{a_call__.7} parent=27 // pred_check
        %p459 = pneg %p141
      $region38: #{a_call__.7} parent=27 // pred_check_branch
        %461 = sbr.rel (%p459) target = $region40
      $region39: #{a_call__.7} parent=27 // pred_region
        _
      $region40: #{a_call__.7} parent=27 // pred_fallthru
        _
      // Predicated region
      $region41: #{a_call__.7} parent=27 // pred_check
        %p462 = pneg %p169
      $region42: #{a_call__.7} parent=27 // pred_check_branch
        %464 = sbr.rel (%p462) target = $region44
      $region43: #{a_call__.7} parent=27 // pred_region
        _
      $region44: #{a_call__.7} parent=27 // pred_fallthru
        _
    $region28: #{a_call__.7} parent=5 // pred_fallthru
      _
    %p465 = scmp.le.s32.totalorder 2, %s11
    // Predicated region
    $region45: #{a_call__.7} parent=5 // pred_check
      %p466 = pneg %p465
    $region46: #{a_call__.7} parent=5 // pred_check_branch
      %468 = sbr.rel (%p466) target = $region48
    $region47: #{a_call__.7} parent=5 // pred_region
      %s469 = ssub.s32 %s11, 2
      // Predicated region
      $region49: #{a_call__.7} parent=47 // pred_check
        %p470 = pneg %p119
      $region50: #{a_call__.7} parent=47 // pred_check_branch
        %472 = sbr.rel (%p470) target = $region52
      $region51: #{a_call__.7} parent=47 // pred_region
        %s473 = smul.u32 4, %s26
        %p474 = scmp.lt.s32.totalorder %s25, 3
        %s475 = scalar_select %p474, %s25, 3
        %p476 = scmp.lt.s32.totalorder %s473, 3
        %s477 = scalar_select %p476, %s473, 3
        %p478 = scmp.lt.s32.totalorder %s24, 0
        %s479 = scalar_select %p478, %s24, 0
        %s480 = sadd.s32 %s479, %s477
        %s481 = smul.addr %s475, 4
        %s482 = sadd.s32 %s480, %s481
        %s483 = smul.addr %s482, 4
        %s484 = scalar_lea.vmem %s2, %s483
      $region52: #{a_call__.7} parent=47 // pred_fallthru
        _
      // Predicated region
      $region53: #{a_call__.7} parent=47 // pred_check
        %p485 = pneg %p147
      $region54: #{a_call__.7} parent=47 // pred_check_branch
        %487 = sbr.rel (%p485) target = $region56
      $region55: #{a_call__.7} parent=47 // pred_region
        %p488 = scmp.lt.s32.totalorder %s25, 3
        %s489 = scalar_select %p488, %s25, 3
        %p490 = scmp.lt.s32.totalorder %s24, 0
        %s491 = scalar_select %p490, %s24, 0
        %s492 = sadd.s32 %s491, %s489
        %s493 = scalar_lea.vmem %s3, %s492
      $region56: #{a_call__.7} parent=47 // pred_fallthru
        _
      // Predicated region
      $region57: #{a_call__.7} parent=47 // pred_check
        %p494 = pneg %p175
      $region58: #{a_call__.7} parent=47 // pred_check_branch
        %496 = sbr.rel (%p494) target = $region60
      $region59: #{a_call__.7} parent=47 // pred_region
        %p497 = scmp.lt.s32.totalorder %s25, 3
        %s498 = scalar_select %p497, %s25, 3
        %p499 = scmp.lt.s32.totalorder %s24, 0
        %s500 = scalar_select %p499, %s24, 0
        %s501 = sadd.s32 %s500, %s498
        %s502 = scalar_lea.vmem %s4, %s501
      $region60: #{a_call__.7} parent=47 // pred_fallthru
        _
    $region48: #{a_call__.7} parent=5 // pred_fallthru
      _
  $region6: #{a_call__.7} parent=0 // loop_footer
    %s15 = sadd.s32 1, %s11
  $region7: #{a_call__.7} parent=0 // loop_footer_branch
    %10 = sbr.rel target = $region3
  $region8: #{a_call__.7} parent=0 // loop_exit
    _

// kernel: a_call__.9
$region0: #{a_call__.9}
  #allocation0 [shape = 'u32[]', space=smem, size = 0x4, offset = 0x4, fixed_abs, tag = 'smem constant byte address 0x4 - core index']
  #allocation1 [shape = 'u32[72,128]{1,0:T(1,128)}', space=vmem, size = 0x9000, scoped, tag = 'internal scratch']
  %s0 = inlined_call_operand.vmem [shape: bf16[128,72], index: 0, kind: input, shape index: {}]
  %s1 = inlined_call_operand.vmem [shape: bf16[72,128], index: 1, kind: input, shape index: {}]
  %s2 = inlined_call_operand.vmem [shape: bf16[128,128], index: 2, kind: output, shape index: {}]
  %s3 = sld [smem:[#allocation0]]
  $region18: #{a_call__.9} parent=0
    _
  %s5 = ssub.s32 1, %s3
  %s6 = scalar_select 0, %s5, %s3
  // Predicated region
  $region2: #{a_call__.9} parent=0 // pred_check
    _
  $region3: #{a_call__.9} parent=0 // pred_check_branch
    %8 = sbr.rel (0) target = $region5
  $region4: #{a_call__.9} parent=0 // pred_region
    _
  $region5: #{a_call__.9} parent=0 // pred_fallthru
    _
  // Predicated region
  $region6: #{a_call__.9} parent=0 // pred_check
    _
  $region7: #{a_call__.9} parent=0 // pred_check_branch
    %10 = sbr.rel (0) target = $region9
  $region8: #{a_call__.9} parent=0 // pred_region
    _
  $region9: #{a_call__.9} parent=0 // pred_fallthru
    _
  %v12 = vld [vmem:[%s0] sm:$0xf]
  %v13 = vld [vmem:[%s0 + $0x4] sm:$0xf]
  %v14 = vld [vmem:[%s0 + $0x8] sm:$0xf]
  %v15 = vld [vmem:[%s0 + $0xc] sm:$0xf]
  %v16 = vld [vmem:[%s0 + $0x10] sm:$0xf]
  %v17 = vld [vmem:[%s0 + $0x14] sm:$0xf]
  %v18 = vld [vmem:[%s0 + $0x18] sm:$0xf]
  %v19 = vld [vmem:[%s0 + $0x1c] sm:$0xf]
  %v20 = vld [vmem:[%s0 + $0x20] sm:$0xf]
  %v21 = vld [vmem:[%s0 + $0x24] sm:$0xf]
  %v22 = vld [vmem:[%s0 + $0x28] sm:$0xf]
  %v23 = vld [vmem:[%s0 + $0x2c] sm:$0xf]
  %v24 = vld [vmem:[%s0 + $0x30] sm:$0xf]
  %v25 = vld [vmem:[%s0 + $0x34] sm:$0xf]
  %v26 = vld [vmem:[%s0 + $0x38] sm:$0xf]
  %v27 = vld [vmem:[%s0 + $0x3c] sm:$0xf]
  %v28 = vld [vmem:[%s1] sm:$0xf]
  %v29 = vld [vmem:[%s1 + $0x4] sm:$0xf]
  %v30 = vld [vmem:[%s1 + $0x8] sm:$0xf]
  %v31 = vld [vmem:[%s1 + $0xc] sm:$0xf]
  %v32 = vld [vmem:[%s1 + $0x10] sm:$0xf]
  %v33 = vld [vmem:[%s1 + $0x14] sm:$0xf]
  %v34 = vld [vmem:[%s1 + $0x18] sm:$0xf]
  %v35 = vld [vmem:[%s1 + $0x1c] sm:$0xf]
  %v36 = vld [vmem:[%s1 + $0x20] sm:$0xf]
  %v53 = vunpack.c.l.b16 %v12
  %v54 = vunpack.c.l.b16 %v13
  %v55 = vunpack.c.l.b16 %v14
  %v56 = vunpack.c.l.b16 %v15
  %v57 = vunpack.c.l.b16 %v16
  %v58 = vunpack.c.l.b16 %v17
  %v59 = vunpack.c.l.b16 %v18
  %v60 = vunpack.c.l.b16 %v19
  %v61 = vunpack.c.l.b16 %v20
  %v62 = vunpack.c.l.b16 %v21
  %v63 = vunpack.c.l.b16 %v22
  %v64 = vunpack.c.l.b16 %v23
  %v65 = vunpack.c.l.b16 %v24
  %v66 = vunpack.c.l.b16 %v25
  %v67 = vunpack.c.l.b16 %v26
  %v68 = vunpack.c.l.b16 %v27
  %v69 = vpack.c.b16 %v54, %v53
  %v70 = vpack.c.b16 %v56, %v55
  %v71 = vpack.c.b16 %v58, %v57
  %v72 = vpack.c.b16 %v60, %v59
  %v73 = vpack.c.b16 %v62, %v61
  %v74 = vpack.c.b16 %v64, %v63
  %v75 = vpack.c.b16 %v66, %v65
  %v76 = vpack.c.b16 %v68, %v67
  %v86 = vunpack.c.l.b16 %v28
  %v87 = vunpack.c.l.b16 %v29
  %v88 = vunpack.c.l.b16 %v30
  %v89 = vunpack.c.l.b16 %v31
  %v90 = vunpack.c.l.b16 %v32
  %v91 = vunpack.c.l.b16 %v33
  %v92 = vunpack.c.l.b16 %v34
  %v93 = vunpack.c.l.b16 %v35
  %v94 = vunpack.c.l.b16 %v36
  %v95 = vpack.c.b16 %v87, %v86
  %v96 = vpack.c.b16 %v89, %v88
  %v97 = vpack.c.b16 %v91, %v90
  %v98 = vpack.c.b16 %v93, %v92
  %v99 = vpack.c.b16 %v94, %v94
  %vm104 = vcmask 588800
  %v106 = vsel %vm104, %v69, 0
  %v109 = vsel %vm104, %v70, 0
  %v112 = vsel %vm104, %v71, 0
  %v115 = vsel %vm104, %v72, 0
  %v118 = vsel %vm104, %v73, 0
  %v121 = vsel %vm104, %v74, 0
  %v124 = vsel %vm104, %v75, 0
  %v127 = vsel %vm104, %v76, 0
  %vm129 = vcmask 1043456
  %v131 = vsel %vm129, %v99, 0
  %133 = vmatpush.bf16.msra.mxu0 0
  %134 = vmatpush.bf16.msra.mxu0 0
  %135 = vmatpush.bf16.msra.mxu0 0
  %136 = vmatpush.bf16.msra.mxu0 %v131
  %137 = vmatpush.bf16.msra.mxu0 %v98
  %138 = vmatpush.bf16.msra.mxu0 %v97
  %139 = vmatpush.bf16.msra.mxu0 %v96
  %140 = vmatpush.bf16.msra.mxu0 %v95
  %141 = vmatmul.bf16.gmra.mxu0 %v106
  %v142 = vpop.f32.mrf.mxu0
  %v143 = vadd.f32 0.0, %v142
  %v144 = vpop.f32.mrf.mxu0
  %v145 = vadd.f32 0.0, %v144
  %146 = vmatmul.bf16.gmra.mxu0 %v109
  %v147 = vpop.f32.mrf.mxu0
  %v148 = vadd.f32 0.0, %v147
  %v149 = vpop.f32.mrf.mxu0
  %v150 = vadd.f32 0.0, %v149
  %151 = vmatmul.bf16.gmra.mxu0 %v112
  %v152 = vpop.f32.mrf.mxu0
  %v153 = vadd.f32 0.0, %v152
  %v154 = vpop.f32.mrf.mxu0
  %v155 = vadd.f32 0.0, %v154
  %156 = vmatmul.bf16.gmra.mxu0 %v115
  %v157 = vpop.f32.mrf.mxu0
  %v158 = vadd.f32 0.0, %v157
  %v159 = vpop.f32.mrf.mxu0
  %v160 = vadd.f32 0.0, %v159
  %161 = vmatmul.bf16.gmra.mxu0 %v118
  %v162 = vpop.f32.mrf.mxu0
  %v163 = vadd.f32 0.0, %v162
  %v164 = vpop.f32.mrf.mxu0
  %v165 = vadd.f32 0.0, %v164
  %166 = vmatmul.bf16.gmra.mxu0 %v121
  %v167 = vpop.f32.mrf.mxu0
  %v168 = vadd.f32 0.0, %v167
  %v169 = vpop.f32.mrf.mxu0
  %v170 = vadd.f32 0.0, %v169
  %171 = vmatmul.bf16.gmra.mxu0 %v124
  %v172 = vpop.f32.mrf.mxu0
  %v173 = vadd.f32 0.0, %v172
  %v174 = vpop.f32.mrf.mxu0
  %v175 = vadd.f32 0.0, %v174
  %176 = vmatmul.bf16.gmra.mxu0 %v127
  %v177 = vpop.f32.mrf.mxu0
  %v178 = vadd.f32 0.0, %v177
  %v179 = vpop.f32.mrf.mxu0
  %v180 = vadd.f32 0.0, %v179
  %181 = vdwg.mxu0
  %v182 = vtanh.pop %v143
  %v183 = vtanh.pop %v145
  %v184 = vtanh.pop %v148
  %v185 = vtanh.pop %v150
  %v186 = vtanh.pop %v153
  %v187 = vtanh.pop %v155
  %v188 = vtanh.pop %v158
  %v189 = vtanh.pop %v160
  %v190 = vtanh.pop %v163
  %v191 = vtanh.pop %v165
  %v192 = vtanh.pop %v168
  %v193 = vtanh.pop %v170
  %v194 = vtanh.pop %v173
  %v195 = vtanh.pop %v175
  %v196 = vtanh.pop %v178
  %v197 = vtanh.pop %v180
  %v198 = vpack.c.bf16 %v182, %v182
  %v199 = vpack.c.bf16 %v183, %v183
  %v200 = vpack.c.bf16 %v184, %v184
  %v201 = vpack.c.bf16 %v185, %v185
  %v202 = vpack.c.bf16 %v186, %v186
  %v203 = vpack.c.bf16 %v187, %v187
  %v204 = vpack.c.bf16 %v188, %v188
  %v205 = vpack.c.bf16 %v189, %v189
  %v206 = vpack.c.bf16 %v190, %v190
  %v207 = vpack.c.bf16 %v191, %v191
  %v208 = vpack.c.bf16 %v192, %v192
  %v209 = vpack.c.bf16 %v193, %v193
  %v210 = vpack.c.bf16 %v194, %v194
  %v211 = vpack.c.bf16 %v195, %v195
  %v212 = vpack.c.bf16 %v196, %v196
  %v213 = vpack.c.bf16 %v197, %v197
  %214 = vst [vmem:[%s2] sm:$0xf] %v198
  %215 = vst [vmem:[%s2 + $0x4] sm:$0xf] %v199
  %216 = vst [vmem:[%s2 + $0x8] sm:$0xf] %v200
  %217 = vst [vmem:[%s2 + $0xc] sm:$0xf] %v201
  %218 = vst [vmem:[%s2 + $0x10] sm:$0xf] %v202
  %219 = vst [vmem:[%s2 + $0x14] sm:$0xf] %v203
  %220 = vst [vmem:[%s2 + $0x18] sm:$0xf] %v204
  %221 = vst [vmem:[%s2 + $0x1c] sm:$0xf] %v205
  %222 = vst [vmem:[%s2 + $0x20] sm:$0xf] %v206
  %223 = vst [vmem:[%s2 + $0x24] sm:$0xf] %v207
  %224 = vst [vmem:[%s2 + $0x28] sm:$0xf] %v208
  %225 = vst [vmem:[%s2 + $0x2c] sm:$0xf] %v209
  %226 = vst [vmem:[%s2 + $0x30] sm:$0xf] %v210
  %227 = vst [vmem:[%s2 + $0x34] sm:$0xf] %v211
  %228 = vst [vmem:[%s2 + $0x38] sm:$0xf] %v212
  %229 = vst [vmem:[%s2 + $0x3c] sm:$0xf] %v213
  // Predicated region
  $region10: #{a_call__.9} parent=0 // pred_check
    _
  $region11: #{a_call__.9} parent=0 // pred_check_branch
    %231 = sbr.rel (0) target = $region13
  $region12: #{a_call__.9} parent=0 // pred_region
    _
  $region13: #{a_call__.9} parent=0 // pred_fallthru
    _
  // Predicated region
  $region14: #{a_call__.9} parent=0 // pred_check
    _
  $region15: #{a_call__.9} parent=0 // pred_check_branch
    %233 = sbr.rel (0) target = $region17
  $region16: #{a_call__.9} parent=0 // pred_region
    _
  $region17: #{a_call__.9} parent=0 // pred_fallthru
    _

</llo_original>
